<compile_context>
chip_gen: v5e
topology: v5e:2x2
jax: 0.10.0
libtpu: 0.0.40
codegen_flags: <defaults>
</compile_context>

<pallas_src>
import functools

import jax
import jax.numpy as jnp
from jax import lax
from jax.experimental import pallas as pl
from jax.experimental.pallas import tpu as pltpu

KERNEL_SIZE = 15
C_IN, C1, C2 = 3, 32, 64
KK = KERNEL_SIZE * KERNEL_SIZE      # 225
KK_PAD = 256                        # lane-dense padded FC output width
K1 = 9 * C_IN                       # 27  (conv1 im2col depth)
K1_PAD = 32                         # padded conv1 im2col depth
K2 = 9 * C1                         # 288 (conv2 im2col depth)


def psf_kernel(xc_ref, w1_ref, b1_ref, w2_ref, b2_ref, wf_ref, bf_ref, o_ref,
               *, H, W):
    # xc_ref : (Bt, H*W, 32)  bf16 conv1 im2col (pre-built in wrapper, K padded to 32)
    # w1_ref : (32, 32)  bf16    b1_ref : (1, 32)   f32
    # w2_ref : (288, 64) bf16    b2_ref : (1, 64)   f32
    # wf_ref : (64, 256) bf16    bf_ref : (1, 256)  f32
    # o_ref  : (Bt, 256) f32
    Bt = xc_ref.shape[0]
    HW = H * W

    # ---- conv1: one fused im2col matmul (Bt*H*W, 32) @ (32, 32) ----
    xc = xc_ref[...].reshape(Bt * HW, K1_PAD)
    acc1 = jnp.dot(xc, w1_ref[...], preferred_element_type=jnp.float32)
    h1 = jnp.maximum(acc1 + b1_ref[...], 0.0)                       # (Bt*HW, 32) f32
    h1 = h1.reshape(Bt, H, W, C1).astype(jnp.bfloat16)

    # ---- padding=1 in registers (no scratch zero-fill, no store->load) ----
    zc = jnp.zeros((Bt, H, 1, C1), jnp.bfloat16)
    zr = jnp.zeros((Bt, 1, W + 2, C1), jnp.bfloat16)
    h1p = jnp.concatenate([zc, h1, zc], axis=2)                     # (Bt, H, W+2, 32)
    h1p = jnp.concatenate([zr, h1p, zr], axis=1)                    # (Bt, H+2, W+2, 32)

    # ---- conv2: single im2col matmul (Bt*H*W, 288) @ (288, 64) ----
    cols = [h1p[:, ky:ky + H, kx:kx + W, :]
            for ky in range(3) for kx in range(3)]
    patch = jnp.concatenate(cols, axis=-1).reshape(Bt * HW, K2)     # bf16, 288 lanes
    acc2 = jnp.dot(patch, w2_ref[...], preferred_element_type=jnp.float32)
    h2 = jnp.maximum(acc2 + b2_ref[...], 0.0)                       # (Bt*HW, 64) f32

    # ---- AdaptiveAvgPool2d((1,1)) == mean over spatial, per sample ----
    pooled = jnp.mean(h2.reshape(Bt, HW, C2), axis=1)               # (Bt, 64)

    # ---- fc -> ReLU -> per-sample normalization (batched) ----
    logits = jnp.dot(pooled.astype(jnp.bfloat16), wf_ref[...],
                     preferred_element_type=jnp.float32) + bf_ref[...]  # (Bt, 256)
    psf = jnp.maximum(logits, 0.0)
    denom = jnp.sum(psf, axis=-1, keepdims=True) + 1e-8   # padded cols are exactly 0
    o_ref[...] = psf / denom


def _pick_bt(B, cap=8):
    """Largest divisor of B that is <= cap (batch block per grid step)."""
    bt = min(B, cap)
    while B % bt:
        bt -= 1
    return bt


def psf_predictor(x_nchw, params, kernel_size=KERNEL_SIZE):
    """x_nchw: (B, 3, H, W) float32 (PyTorch NCHW convention)."""
    w1, b1, w2, b2, wf, bf = params
    B, C, H, W = x_nchw.shape
    kk = kernel_size * kernel_size
    assert C == C_IN and kk == KK

    # NCHW -> NHWC -> pad=1 -> conv1 im2col in XLA (lane-dense kernel input).
    x = jnp.transpose(x_nchw, (0, 2, 3, 1))
    xp = jnp.pad(x, ((0, 0), (1, 1), (1, 1), (0, 0)))
    cols = [xp[:, ky:ky + H, kx:kx + W, :] for ky in range(3) for kx in range(3)]
    x_col = jnp.concatenate(cols, axis=-1).reshape(B, H * W, K1)
    x_col = jnp.pad(x_col, ((0, 0), (0, 0), (0, K1_PAD - K1))).astype(jnp.bfloat16)

    # OIHW -> (kh*kw*Cin, Cout) matching the [tap-major, channel-minor] im2col order.
    w1r = jnp.transpose(w1, (2, 3, 1, 0)).reshape(K1, C1)
    w1r = jnp.pad(w1r, ((0, K1_PAD - K1), (0, 0))).astype(jnp.bfloat16)
    w2r = jnp.transpose(w2, (2, 3, 1, 0)).reshape(K2, C2).astype(jnp.bfloat16)
    wfr = jnp.pad(wf.T, ((0, 0), (0, KK_PAD - kk))).astype(jnp.bfloat16)
    b1r = b1.reshape(1, C1).astype(jnp.float32)
    b2r = b2.reshape(1, C2).astype(jnp.float32)
    bfr = jnp.pad(bf, (0, KK_PAD - kk)).reshape(1, KK_PAD).astype(jnp.float32)

    bt = _pick_bt(B)
    grid = (B // bt,)

    out = pl.pallas_call(
        functools.partial(psf_kernel, H=H, W=W),
        out_shape=jax.ShapeDtypeStruct((B, KK_PAD), jnp.float32),
        grid_spec=pltpu.PrefetchScalarGridSpec(
            num_scalar_prefetch=0,
            grid=grid,
            in_specs=[
                pl.BlockSpec((bt, H * W, K1_PAD), lambda b: (b, 0, 0)),
                pl.BlockSpec((K1_PAD, C1), lambda b: (0, 0)),
                pl.BlockSpec((1, C1), lambda b: (0, 0)),
                pl.BlockSpec((K2, C2), lambda b: (0, 0)),
                pl.BlockSpec((1, C2), lambda b: (0, 0)),
                pl.BlockSpec((C2, KK_PAD), lambda b: (0, 0)),
                pl.BlockSpec((1, KK_PAD), lambda b: (0, 0)),
            ],
            out_specs=pl.BlockSpec((bt, KK_PAD), lambda b: (b, 0)),
        ),
        compiler_params=pltpu.CompilerParams(
            dimension_semantics=("parallel",)),
    )(x_col, w1r, b1r, w2r, b2r, wfr, bfr)

    return out[:, :kk].reshape(B, 1, kernel_size, kernel_size)


def psf_reference(x_nchw, params, kernel_size=KERNEL_SIZE):
    """Pure-JAX f32 reference mirroring the PyTorch module."""
    w1, b1, w2, b2, wf, bf = params
    dn = ('NCHW', 'OIHW', 'NCHW')
    y = lax.conv_general_dilated(x_nchw, w1, (1, 1), 'SAME',
                                 dimension_numbers=dn) + b1[None, :, None, None]
    y = jnp.maximum(y, 0.0)
    y = lax.conv_general_dilated(y, w2, (1, 1), 'SAME',
                                 dimension_numbers=dn) + b2[None, :, None, None]
    y = jnp.maximum(y, 0.0)
    pooled = jnp.mean(y, axis=(2, 3))                 # (B, 64)
    fc = pooled @ wf.T + bf
    fc = jnp.maximum(fc, 0.0).reshape(-1, 1, kernel_size, kernel_size)
    return fc / (fc.sum(axis=(2, 3), keepdims=True) + 1e-8)


def init_params(key, kernel_size=KERNEL_SIZE):
    k1, k2, k3 = jax.random.split(key, 3)
    w1 = 0.2 * jax.random.normal(k1, (C1, C_IN, 3, 3), jnp.float32)   # OIHW
    b1 = jnp.linspace(-0.1, 0.1, C1, dtype=jnp.float32)
    w2 = 0.05 * jax.random.normal(k2, (C2, C1, 3, 3), jnp.float32)
    b2 = jnp.linspace(-0.05, 0.05, C2, dtype=jnp.float32)
    wf = 0.1 * jax.random.normal(k3, (kernel_size * kernel_size, C2), jnp.float32)
    bf = jnp.linspace(-0.02, 0.02, kernel_size * kernel_size, dtype=jnp.float32)
    return (w1, b1, w2, b2, wf, bf)


if __name__ == "__main__":
    key = jax.random.PRNGKey(0)
    kx, kp = jax.random.split(key)
    B, H, W = 2, 16, 16
    x = jax.random.normal(kx, (B, C_IN, H, W), jnp.float32)   # NCHW like PyTorch
    params = init_params(kp)

    out = jax.block_until_ready(psf_predictor(x, params))
    ref = jax.block_until_ready(psf_reference(x, params))

    assert out.shape == (B, 1, KERNEL_SIZE, KERNEL_SIZE)
    # bf16 MXU operands with f32 accumulation -> loosened tolerance vs f32 reference.
    max_err = float(jnp.max(jnp.abs(out - ref)))
    assert jnp.allclose(out, ref, rtol=3e-2, atol=5e-4), max_err
    # outputs are normalized PSFs: each sums to ~1
    assert jnp.allclose(out.sum(axis=(2, 3)), 1.0, atol=1e-3)

    print("KERNEL_OK")
</pallas_src>

<mosaic_0001>
module attributes {stable_mosaic.version = 11 : i64} {
  func.func @psf_kernel(%arg0: i32, %arg1: memref<2x256x32xbf16, #tpu.memory_space<vmem>>, %arg2: memref<32x32xbf16, #tpu.memory_space<vmem>>, %arg3: memref<1x32xf32, #tpu.memory_space<vmem>>, %arg4: memref<288x64xbf16, #tpu.memory_space<vmem>>, %arg5: memref<1x64xf32, #tpu.memory_space<vmem>>, %arg6: memref<64x256xbf16, #tpu.memory_space<vmem>>, %arg7: memref<1x256xf32, #tpu.memory_space<vmem>>, %arg8: memref<2x256xf32, #tpu.memory_space<vmem>>) attributes {dimension_semantics = [#tpu.dimension_semantics<parallel>], iteration_bounds = array<i64: 1>, scalar_prefetch = 0 : i64, scratch_operands = 0 : i64, tpu.core_type = #tpu.core_type<tc>, window_params = [{transform_indices = @transform_0, window_bounds = array<i64: 2, 256, 32>}, {pipeline_mode = #tpu.pipeline_mode<synchronous>, transform_indices = @transform_1, window_bounds = array<i64: 32, 32>}, {pipeline_mode = #tpu.pipeline_mode<synchronous>, transform_indices = @transform_2, window_bounds = array<i64: 1, 32>}, {pipeline_mode = #tpu.pipeline_mode<synchronous>, transform_indices = @transform_3, window_bounds = array<i64: 288, 64>}, {pipeline_mode = #tpu.pipeline_mode<synchronous>, transform_indices = @transform_4, window_bounds = array<i64: 1, 64>}, {pipeline_mode = #tpu.pipeline_mode<synchronous>, transform_indices = @transform_5, window_bounds = array<i64: 64, 256>}, {pipeline_mode = #tpu.pipeline_mode<synchronous>, transform_indices = @transform_6, window_bounds = array<i64: 1, 256>}, {transform_indices = @transform_7, window_bounds = array<i64: 2, 256>}]} {
    %c0 = arith.constant 0 : index
    %c0_0 = arith.constant 0 : index
    %c0_1 = arith.constant 0 : index
    %0 = vector.load %arg1[%c0, %c0_0, %c0_1] : memref<2x256x32xbf16, #tpu.memory_space<vmem>>, vector<2x256x32xbf16>
    %1 = vector.shape_cast %0 : vector<2x256x32xbf16> to vector<512x32xbf16>
    %c0_2 = arith.constant 0 : index
    %c0_3 = arith.constant 0 : index
    %2 = vector.load %arg2[%c0_2, %c0_3] : memref<32x32xbf16, #tpu.memory_space<vmem>>, vector<32x32xbf16>
    %cst = arith.constant dense<0.000000e+00> : vector<512x32xf32>
    %3 = tpu.matmul %1, %2, %cst {dimension_numbers = #tpu.dot_dimension_numbers<[1], [0], [0], [1], [0, 0, 1, 1], [], []>} : vector<512x32xbf16>, vector<32x32xbf16>, vector<512x32xf32> -> vector<512x32xf32>
    %c0_4 = arith.constant 0 : index
    %c0_5 = arith.constant 0 : index
    %4 = vector.load %arg3[%c0_4, %c0_5] : memref<1x32xf32, #tpu.memory_space<vmem>>, vector<1x32xf32>
    %5 = vector.broadcast %4 : vector<1x32xf32> to vector<512x32xf32>
    %6 = arith.addf %3, %5 : vector<512x32xf32>
    %cst_6 = arith.constant 0.000000e+00 : f32
    %7 = vector.broadcast %cst_6 : f32 to vector<512x32xf32>
    %8 = arith.maximumf %6, %7 : vector<512x32xf32>
    %9 = vector.shape_cast %8 : vector<512x32xf32> to vector<2x16x16x32xf32>
    %10 = arith.truncf %9 : vector<2x16x16x32xf32> to vector<2x16x16x32xbf16>
    %cst_7 = arith.constant 0.000000e+00 : bf16
    %11 = vector.broadcast %cst_7 : bf16 to vector<2x16x1x32xbf16>
    %cst_8 = arith.constant 0.000000e+00 : bf16
    %12 = vector.broadcast %cst_8 : bf16 to vector<2x1x18x32xbf16>
    %13 = tpu.concatenate %11, %10, %11 in 2 : vector<2x16x1x32xbf16>, vector<2x16x16x32xbf16>, vector<2x16x1x32xbf16> -> vector<2x16x18x32xbf16>
    %14 = tpu.concatenate %12, %13, %12 in 1 : vector<2x1x18x32xbf16>, vector<2x16x18x32xbf16>, vector<2x1x18x32xbf16> -> vector<2x18x18x32xbf16>
    %15 = vector.extract_strided_slice %14 {offsets = [0, 0, 0, 0], sizes = [2, 16, 16, 32], strides = [1, 1, 1, 1]} : vector<2x18x18x32xbf16> to vector<2x16x16x32xbf16>
    %16 = vector.extract_strided_slice %14 {offsets = [0, 0, 1, 0], sizes = [2, 16, 16, 32], strides = [1, 1, 1, 1]} : vector<2x18x18x32xbf16> to vector<2x16x16x32xbf16>
    %17 = vector.extract_strided_slice %14 {offsets = [0, 0, 2, 0], sizes = [2, 16, 16, 32], strides = [1, 1, 1, 1]} : vector<2x18x18x32xbf16> to vector<2x16x16x32xbf16>
    %18 = vector.extract_strided_slice %14 {offsets = [0, 1, 0, 0], sizes = [2, 16, 16, 32], strides = [1, 1, 1, 1]} : vector<2x18x18x32xbf16> to vector<2x16x16x32xbf16>
    %19 = vector.extract_strided_slice %14 {offsets = [0, 1, 1, 0], sizes = [2, 16, 16, 32], strides = [1, 1, 1, 1]} : vector<2x18x18x32xbf16> to vector<2x16x16x32xbf16>
    %20 = vector.extract_strided_slice %14 {offsets = [0, 1, 2, 0], sizes = [2, 16, 16, 32], strides = [1, 1, 1, 1]} : vector<2x18x18x32xbf16> to vector<2x16x16x32xbf16>
    %21 = vector.extract_strided_slice %14 {offsets = [0, 2, 0, 0], sizes = [2, 16, 16, 32], strides = [1, 1, 1, 1]} : vector<2x18x18x32xbf16> to vector<2x16x16x32xbf16>
    %22 = vector.extract_strided_slice %14 {offsets = [0, 2, 1, 0], sizes = [2, 16, 16, 32], strides = [1, 1, 1, 1]} : vector<2x18x18x32xbf16> to vector<2x16x16x32xbf16>
    %23 = vector.extract_strided_slice %14 {offsets = [0, 2, 2, 0], sizes = [2, 16, 16, 32], strides = [1, 1, 1, 1]} : vector<2x18x18x32xbf16> to vector<2x16x16x32xbf16>
    %24 = tpu.concatenate %15, %16, %17, %18, %19, %20, %21, %22, %23 in 3 : vector<2x16x16x32xbf16>, vector<2x16x16x32xbf16>, vector<2x16x16x32xbf16>, vector<2x16x16x32xbf16>, vector<2x16x16x32xbf16>, vector<2x16x16x32xbf16>, vector<2x16x16x32xbf16>, vector<2x16x16x32xbf16>, vector<2x16x16x32xbf16> -> vector<2x16x16x288xbf16>
    %25 = vector.shape_cast %24 : vector<2x16x16x288xbf16> to vector<512x288xbf16>
    %c0_9 = arith.constant 0 : index
    %c0_10 = arith.constant 0 : index
    %26 = vector.load %arg4[%c0_9, %c0_10] : memref<288x64xbf16, #tpu.memory_space<vmem>>, vector<288x64xbf16>
    %cst_11 = arith.constant dense<0.000000e+00> : vector<512x64xf32>
    %27 = tpu.matmul %25, %26, %cst_11 {dimension_numbers = #tpu.dot_dimension_numbers<[1], [0], [0], [1], [0, 0, 1, 1], [], []>} : vector<512x288xbf16>, vector<288x64xbf16>, vector<512x64xf32> -> vector<512x64xf32>
    %c0_12 = arith.constant 0 : index
    %c0_13 = arith.constant 0 : index
    %28 = vector.load %arg5[%c0_12, %c0_13] : memref<1x64xf32, #tpu.memory_space<vmem>>, vector<1x64xf32>
    %29 = vector.broadcast %28 : vector<1x64xf32> to vector<512x64xf32>
    %30 = arith.addf %27, %29 : vector<512x64xf32>
    %cst_14 = arith.constant 0.000000e+00 : f32
    %31 = vector.broadcast %cst_14 : f32 to vector<512x64xf32>
    %32 = arith.maximumf %30, %31 : vector<512x64xf32>
    %33 = vector.shape_cast %32 : vector<512x64xf32> to vector<2x256x64xf32>
    %cst_15 = arith.constant dense<0.000000e+00> : vector<2x64xf32>
    %34 = vector.multi_reduction <add>, %33, %cst_15 [1] : vector<2x256x64xf32> to vector<2x64xf32>
    %cst_16 = arith.constant 2.560000e+02 : f32
    %35 = vector.broadcast %cst_16 : f32 to vector<2x64xf32>
    %36 = arith.divf %34, %35 : vector<2x64xf32>
    %37 = arith.truncf %36 : vector<2x64xf32> to vector<2x64xbf16>
    %c0_17 = arith.constant 0 : index
    %c0_18 = arith.constant 0 : index
    %38 = vector.load %arg6[%c0_17, %c0_18] : memref<64x256xbf16, #tpu.memory_space<vmem>>, vector<64x256xbf16>
    %cst_19 = arith.constant dense<0.000000e+00> : vector<2x256xf32>
    %39 = tpu.matmul %37, %38, %cst_19 {dimension_numbers = #tpu.dot_dimension_numbers<[1], [0], [0], [1], [0, 0, 1, 1], [], []>} : vector<2x64xbf16>, vector<64x256xbf16>, vector<2x256xf32> -> vector<2x256xf32>
    %c0_20 = arith.constant 0 : index
    %c0_21 = arith.constant 0 : index
    %40 = vector.load %arg7[%c0_20, %c0_21] : memref<1x256xf32, #tpu.memory_space<vmem>>, vector<1x256xf32>
    %41 = vector.broadcast %40 : vector<1x256xf32> to vector<2x256xf32>
    %42 = arith.addf %39, %41 : vector<2x256xf32>
    %cst_22 = arith.constant 0.000000e+00 : f32
    %43 = vector.broadcast %cst_22 : f32 to vector<2x256xf32>
    %44 = arith.maximumf %42, %43 : vector<2x256xf32>
    %cst_23 = arith.constant dense<0.000000e+00> : vector<2xf32>
    %45 = vector.multi_reduction <add>, %44, %cst_23 [1] : vector<2x256xf32> to vector<2xf32>
    %46 = vector.shape_cast %45 : vector<2xf32> to vector<2x1xf32>
    %cst_24 = arith.constant 9.99999993E-9 : f32
    %47 = vector.broadcast %cst_24 : f32 to vector<2x1xf32>
    %48 = arith.addf %46, %47 : vector<2x1xf32>
    %49 = vector.broadcast %48 : vector<2x1xf32> to vector<2x256xf32>
    %50 = arith.divf %44, %49 : vector<2x256xf32>
    %c0_25 = arith.constant 0 : index
    %c0_26 = arith.constant 0 : index
    %51 = vector.load %arg8[%c0_25, %c0_26] : memref<2x256xf32, #tpu.memory_space<vmem>>, vector<2x256xf32>
    tpu.vector_store %arg8[%c0_25, %c0_26], %50 {strides = array<i32>} : memref<2x256xf32, #tpu.memory_space<vmem>>, vector<2x256xf32>,
    return
  }
  func.func @transform_0(%arg0: i32) -> (i32, i32, i32) {
    %c0_i32 = arith.constant 0 : i32
    %c0_i32_0 = arith.constant 0 : i32
    %c0_i32_1 = arith.constant 0 : i32
    return %arg0, %c0_i32, %c0_i32_0 : i32, i32, i32
  }
  func.func @transform_1(%arg0: i32) -> (i32, i32) {
    %c0_i32 = arith.constant 0 : i32
    %c0_i32_0 = arith.constant 0 : i32
    %c0_i32_1 = arith.constant 0 : i32
    return %c0_i32, %c0_i32_0 : i32, i32
  }
  func.func @transform_2(%arg0: i32) -> (i32, i32) {
    %c0_i32 = arith.constant 0 : i32
    %c0_i32_0 = arith.constant 0 : i32
    %c0_i32_1 = arith.constant 0 : i32
    return %c0_i32, %c0_i32_0 : i32, i32
  }
  func.func @transform_3(%arg0: i32) -> (i32, i32) {
    %c0_i32 = arith.constant 0 : i32
    %c0_i32_0 = arith.constant 0 : i32
    %c0_i32_1 = arith.constant 0 : i32
    return %c0_i32, %c0_i32_0 : i32, i32
  }
  func.func @transform_4(%arg0: i32) -> (i32, i32) {
    %c0_i32 = arith.constant 0 : i32
    %c0_i32_0 = arith.constant 0 : i32
    %c0_i32_1 = arith.constant 0 : i32
    return %c0_i32, %c0_i32_0 : i32, i32
  }
  func.func @transform_5(%arg0: i32) -> (i32, i32) {
    %c0_i32 = arith.constant 0 : i32
    %c0_i32_0 = arith.constant 0 : i32
    %c0_i32_1 = arith.constant 0 : i32
    return %c0_i32, %c0_i32_0 : i32, i32
  }
  func.func @transform_6(%arg0: i32) -> (i32, i32) {
    %c0_i32 = arith.constant 0 : i32
    %c0_i32_0 = arith.constant 0 : i32
    %c0_i32_1 = arith.constant 0 : i32
    return %c0_i32, %c0_i32_0 : i32, i32
  }
  func.func @transform_7(%arg0: i32) -> (i32, i32) {
    %c0_i32 = arith.constant 0 : i32
    %c0_i32_0 = arith.constant 0 : i32
    return %arg0, %c0_i32 : i32, i32
  }
}

</mosaic_0001>

<llo_original>
// kernel: tpu_custom_call.1
$region0: #{tpu_custom_call.1}
  #allocation0 [shape = 'u32[]', space=smem, size = 0x4, offset = 0x4, fixed_abs, tag = 'smem constant byte address 0x4 - core index']
  #allocation1 [shape = 'u32[72,128]{1,0:T(1,128)}', space=vmem, size = 0x9000, scoped, tag = 'internal scratch']
  %s0 = inlined_call_operand.vmem [shape: bf16[2,256,32], index: 0, kind: input, shape index: {}]
  %s1 = inlined_call_operand.vmem [shape: bf16[32,32], index: 1, kind: input, shape index: {}]
  %s2 = inlined_call_operand.vmem [shape: f32[1,32], index: 2, kind: input, shape index: {}]
  %s3 = inlined_call_operand.vmem [shape: bf16[288,64], index: 3, kind: input, shape index: {}]
  %s4 = inlined_call_operand.vmem [shape: f32[1,64], index: 4, kind: input, shape index: {}]
  %s5 = inlined_call_operand.vmem [shape: bf16[64,256], index: 5, kind: input, shape index: {}]
  %s6 = inlined_call_operand.vmem [shape: f32[1,256], index: 6, kind: input, shape index: {}]
  %s7 = inlined_call_operand.hbm [shape: f32[2,256], index: 7, kind: output, shape index: {}]
  %s8 = sld [smem:[#allocation0]]
  $region38: #{tpu_custom_call.1} parent=0
    _
  %s10 = ssub.s32 1, %s8
  %s11 = scalar_select 0, %s10, %s8
  $region1: #{tpu_custom_call.1} parent=0
    #allocation2 [shape = 'u8[2048]{0}', space=vmem, size = 0x800, scoped, tag = 'output window, operand 0, single buffered']
    #allocation3 [shape = 's32[1]{0}', space=sflag, size = 0x4, scoped, tag = 'scoped memory for tpu_custom_call.1']
    %12 = vsyncpa [#allocation3], 0
    // Predicated region
    $region2: #{tpu_custom_call.1} parent=1 // pred_check
      _
    $region3: #{tpu_custom_call.1} parent=1 // pred_check_branch
      %14 = sbr.rel (0) target = $region5
    $region4: #{tpu_custom_call.1} parent=1 // pred_region
      _
    $region5: #{tpu_custom_call.1} parent=1 // pred_fallthru
      _
    // Predicated region
    $region6: #{tpu_custom_call.1} parent=1 // pred_check
      _
    $region7: #{tpu_custom_call.1} parent=1 // pred_check_branch
      %16 = sbr.rel (0) target = $region9
    $region8: #{tpu_custom_call.1} parent=1 // pred_region
      _
    $region9: #{tpu_custom_call.1} parent=1 // pred_fallthru
      _
    // Predicated region
    $region10: #{tpu_custom_call.1} parent=1 // pred_check
      _
    $region11: #{tpu_custom_call.1} parent=1 // pred_check_branch
      %18 = sbr.rel (0) target = $region13
    $region12: #{tpu_custom_call.1} parent=1 // pred_region
      _
    $region13: #{tpu_custom_call.1} parent=1 // pred_fallthru
      _
    // Predicated region
    $region14: #{tpu_custom_call.1} parent=1 // pred_check
      _
    $region15: #{tpu_custom_call.1} parent=1 // pred_check_branch
      %20 = sbr.rel (0) target = $region17
    $region16: #{tpu_custom_call.1} parent=1 // pred_region
      _
    $region17: #{tpu_custom_call.1} parent=1 // pred_fallthru
      _
    // Predicated region
    $region18: #{tpu_custom_call.1} parent=1 // pred_check
      _
    $region19: #{tpu_custom_call.1} parent=1 // pred_check_branch
      %22 = sbr.rel (0) target = $region21
    $region20: #{tpu_custom_call.1} parent=1 // pred_region
      _
    $region21: #{tpu_custom_call.1} parent=1 // pred_fallthru
      _
    // Predicated region
    $region22: #{tpu_custom_call.1} parent=1 // pred_check
      _
    $region23: #{tpu_custom_call.1} parent=1 // pred_check_branch
      %24 = sbr.rel (0) target = $region25
    $region24: #{tpu_custom_call.1} parent=1 // pred_region
      _
    $region25: #{tpu_custom_call.1} parent=1 // pred_fallthru
      _
    // Predicated region
    $region26: #{tpu_custom_call.1} parent=1 // pred_check
      _
    $region27: #{tpu_custom_call.1} parent=1 // pred_check_branch
      %26 = sbr.rel (0) target = $region29
    $region28: #{tpu_custom_call.1} parent=1 // pred_region
      _
    $region29: #{tpu_custom_call.1} parent=1 // pred_fallthru
      _
    %v28 = vld [vmem:[%s0] sm:$0xf]
    %v29 = vld [vmem:[%s0 + $0x4] sm:$0xf]
    %v30 = vld [vmem:[%s0 + $0x8] sm:$0xf]
    %v31 = vld [vmem:[%s0 + $0xc] sm:$0xf]
    %v32 = vld [vmem:[%s0 + $0x10] sm:$0xf]
    %v33 = vld [vmem:[%s0 + $0x14] sm:$0xf]
    %v34 = vld [vmem:[%s0 + $0x18] sm:$0xf]
    %v35 = vld [vmem:[%s0 + $0x1c] sm:$0xf]
    %v36 = vld [vmem:[%s0 + $0x20] sm:$0xf]
    %v37 = vld [vmem:[%s0 + $0x24] sm:$0xf]
    %v38 = vld [vmem:[%s0 + $0x28] sm:$0xf]
    %v39 = vld [vmem:[%s0 + $0x2c] sm:$0xf]
    %v40 = vld [vmem:[%s0 + $0x30] sm:$0xf]
    %v41 = vld [vmem:[%s0 + $0x34] sm:$0xf]
    %v42 = vld [vmem:[%s0 + $0x38] sm:$0xf]
    %v43 = vld [vmem:[%s0 + $0x3c] sm:$0xf]
    %v44 = vld [vmem:[%s0 + $0x40] sm:$0xf]
    %v45 = vld [vmem:[%s0 + $0x44] sm:$0xf]
    %v46 = vld [vmem:[%s0 + $0x48] sm:$0xf]
    %v47 = vld [vmem:[%s0 + $0x4c] sm:$0xf]
    %v48 = vld [vmem:[%s0 + $0x50] sm:$0xf]
    %v49 = vld [vmem:[%s0 + $0x54] sm:$0xf]
    %v50 = vld [vmem:[%s0 + $0x58] sm:$0xf]
    %v51 = vld [vmem:[%s0 + $0x5c] sm:$0xf]
    %v52 = vld [vmem:[%s0 + $0x60] sm:$0xf]
    %v53 = vld [vmem:[%s0 + $0x64] sm:$0xf]
    %v54 = vld [vmem:[%s0 + $0x68] sm:$0xf]
    %v55 = vld [vmem:[%s0 + $0x6c] sm:$0xf]
    %v56 = vld [vmem:[%s0 + $0x70] sm:$0xf]
    %v57 = vld [vmem:[%s0 + $0x74] sm:$0xf]
    %v58 = vld [vmem:[%s0 + $0x78] sm:$0xf]
    %v59 = vld [vmem:[%s0 + $0x7c] sm:$0xf]
    %v60 = vld [vmem:[%s0 + $0x80] sm:$0xf]
    %v61 = vld [vmem:[%s0 + $0x84] sm:$0xf]
    %v62 = vld [vmem:[%s0 + $0x88] sm:$0xf]
    %v63 = vld [vmem:[%s0 + $0x8c] sm:$0xf]
    %v64 = vld [vmem:[%s0 + $0x90] sm:$0xf]
    %v65 = vld [vmem:[%s0 + $0x94] sm:$0xf]
    %v66 = vld [vmem:[%s0 + $0x98] sm:$0xf]
    %v67 = vld [vmem:[%s0 + $0x9c] sm:$0xf]
    %v68 = vld [vmem:[%s0 + $0xa0] sm:$0xf]
    %v69 = vld [vmem:[%s0 + $0xa4] sm:$0xf]
    %v70 = vld [vmem:[%s0 + $0xa8] sm:$0xf]
    %v71 = vld [vmem:[%s0 + $0xac] sm:$0xf]
    %v72 = vld [vmem:[%s0 + $0xb0] sm:$0xf]
    %v73 = vld [vmem:[%s0 + $0xb4] sm:$0xf]
    %v74 = vld [vmem:[%s0 + $0xb8] sm:$0xf]
    %v75 = vld [vmem:[%s0 + $0xbc] sm:$0xf]
    %v76 = vld [vmem:[%s0 + $0xc0] sm:$0xf]
    %v77 = vld [vmem:[%s0 + $0xc4] sm:$0xf]
    %v78 = vld [vmem:[%s0 + $0xc8] sm:$0xf]
    %v79 = vld [vmem:[%s0 + $0xcc] sm:$0xf]
    %v80 = vld [vmem:[%s0 + $0xd0] sm:$0xf]
    %v81 = vld [vmem:[%s0 + $0xd4] sm:$0xf]
    %v82 = vld [vmem:[%s0 + $0xd8] sm:$0xf]
    %v83 = vld [vmem:[%s0 + $0xdc] sm:$0xf]
    %v84 = vld [vmem:[%s0 + $0xe0] sm:$0xf]
    %v85 = vld [vmem:[%s0 + $0xe4] sm:$0xf]
    %v86 = vld [vmem:[%s0 + $0xe8] sm:$0xf]
    %v87 = vld [vmem:[%s0 + $0xec] sm:$0xf]
    %v88 = vld [vmem:[%s0 + $0xf0] sm:$0xf]
    %v89 = vld [vmem:[%s0 + $0xf4] sm:$0xf]
    %v90 = vld [vmem:[%s0 + $0xf8] sm:$0xf]
    %v91 = vld [vmem:[%s0 + $0xfc] sm:$0xf]
    %v92 = vld [vmem:[%s1] sm:$0xf]
    %v93 = vld [vmem:[%s1 + $0x4] sm:$0xf]
    %v94 = vld [vmem:[%s1 + $0x8] sm:$0xf]
    %v95 = vld [vmem:[%s1 + $0xc] sm:$0xf]
    %v96 = vld [vmem:[%s2] sm:$0x1]
    %v98 = vperm.slane %v96, 0
    %v164 = vunpack.c.l.b16 %v28
    %v165 = vunpack.c.l.b16 %v29
    %v166 = vunpack.c.l.b16 %v30
    %v167 = vunpack.c.l.b16 %v31
    %v168 = vunpack.c.l.b16 %v32
    %v169 = vunpack.c.l.b16 %v33
    %v170 = vunpack.c.l.b16 %v34
    %v171 = vunpack.c.l.b16 %v35
    %v172 = vunpack.c.l.b16 %v36
    %v173 = vunpack.c.l.b16 %v37
    %v174 = vunpack.c.l.b16 %v38
    %v175 = vunpack.c.l.b16 %v39
    %v176 = vunpack.c.l.b16 %v40
    %v177 = vunpack.c.l.b16 %v41
    %v178 = vunpack.c.l.b16 %v42
    %v179 = vunpack.c.l.b16 %v43
    %v180 = vunpack.c.l.b16 %v44
    %v181 = vunpack.c.l.b16 %v45
    %v182 = vunpack.c.l.b16 %v46
    %v183 = vunpack.c.l.b16 %v47
    %v184 = vunpack.c.l.b16 %v48
    %v185 = vunpack.c.l.b16 %v49
    %v186 = vunpack.c.l.b16 %v50
    %v187 = vunpack.c.l.b16 %v51
    %v188 = vunpack.c.l.b16 %v52
    %v189 = vunpack.c.l.b16 %v53
    %v190 = vunpack.c.l.b16 %v54
    %v191 = vunpack.c.l.b16 %v55
    %v192 = vunpack.c.l.b16 %v56
    %v193 = vunpack.c.l.b16 %v57
    %v194 = vunpack.c.l.b16 %v58
    %v195 = vunpack.c.l.b16 %v59
    %v196 = vunpack.c.l.b16 %v60
    %v197 = vunpack.c.l.b16 %v61
    %v198 = vunpack.c.l.b16 %v62
    %v199 = vunpack.c.l.b16 %v63
    %v200 = vunpack.c.l.b16 %v64
    %v201 = vunpack.c.l.b16 %v65
    %v202 = vunpack.c.l.b16 %v66
    %v203 = vunpack.c.l.b16 %v67
    %v204 = vunpack.c.l.b16 %v68
    %v205 = vunpack.c.l.b16 %v69
    %v206 = vunpack.c.l.b16 %v70
    %v207 = vunpack.c.l.b16 %v71
    %v208 = vunpack.c.l.b16 %v72
    %v209 = vunpack.c.l.b16 %v73
    %v210 = vunpack.c.l.b16 %v74
    %v211 = vunpack.c.l.b16 %v75
    %v212 = vunpack.c.l.b16 %v76
    %v213 = vunpack.c.l.b16 %v77
    %v214 = vunpack.c.l.b16 %v78
    %v215 = vunpack.c.l.b16 %v79
    %v216 = vunpack.c.l.b16 %v80
    %v217 = vunpack.c.l.b16 %v81
    %v218 = vunpack.c.l.b16 %v82
    %v219 = vunpack.c.l.b16 %v83
    %v220 = vunpack.c.l.b16 %v84
    %v221 = vunpack.c.l.b16 %v85
    %v222 = vunpack.c.l.b16 %v86
    %v223 = vunpack.c.l.b16 %v87
    %v224 = vunpack.c.l.b16 %v88
    %v225 = vunpack.c.l.b16 %v89
    %v226 = vunpack.c.l.b16 %v90
    %v227 = vunpack.c.l.b16 %v91
    %v228 = vpack.c.b16 %v165, %v164
    %v229 = vpack.c.b16 %v167, %v166
    %v230 = vpack.c.b16 %v169, %v168
    %v231 = vpack.c.b16 %v171, %v170
    %v232 = vpack.c.b16 %v173, %v172
    %v233 = vpack.c.b16 %v175, %v174
    %v234 = vpack.c.b16 %v177, %v176
    %v235 = vpack.c.b16 %v179, %v178
    %v236 = vpack.c.b16 %v181, %v180
    %v237 = vpack.c.b16 %v183, %v182
    %v238 = vpack.c.b16 %v185, %v184
    %v239 = vpack.c.b16 %v187, %v186
    %v240 = vpack.c.b16 %v189, %v188
    %v241 = vpack.c.b16 %v191, %v190
    %v242 = vpack.c.b16 %v193, %v192
    %v243 = vpack.c.b16 %v195, %v194
    %v244 = vpack.c.b16 %v197, %v196
    %v245 = vpack.c.b16 %v199, %v198
    %v246 = vpack.c.b16 %v201, %v200
    %v247 = vpack.c.b16 %v203, %v202
    %v248 = vpack.c.b16 %v205, %v204
    %v249 = vpack.c.b16 %v207, %v206
    %v250 = vpack.c.b16 %v209, %v208
    %v251 = vpack.c.b16 %v211, %v210
    %v252 = vpack.c.b16 %v213, %v212
    %v253 = vpack.c.b16 %v215, %v214
    %v254 = vpack.c.b16 %v217, %v216
    %v255 = vpack.c.b16 %v219, %v218
    %v256 = vpack.c.b16 %v221, %v220
    %v257 = vpack.c.b16 %v223, %v222
    %v258 = vpack.c.b16 %v225, %v224
    %v259 = vpack.c.b16 %v227, %v226
    %v264 = vunpack.c.l.b16 %v92
    %v265 = vunpack.c.l.b16 %v93
    %v266 = vunpack.c.l.b16 %v94
    %v267 = vunpack.c.l.b16 %v95
    %v268 = vpack.c.b16 %v265, %v264
    %v269 = vpack.c.b16 %v267, %v266
    %vm272 = vcmask 261120
    %v274 = vsel %vm272, %v228, 0
    %v277 = vsel %vm272, %v229, 0
    %v280 = vsel %vm272, %v230, 0
    %v283 = vsel %vm272, %v231, 0
    %v286 = vsel %vm272, %v232, 0
    %v289 = vsel %vm272, %v233, 0
    %v292 = vsel %vm272, %v234, 0
    %v295 = vsel %vm272, %v235, 0
    %v298 = vsel %vm272, %v236, 0
    %v301 = vsel %vm272, %v237, 0
    %v304 = vsel %vm272, %v238, 0
    %v307 = vsel %vm272, %v239, 0
    %v310 = vsel %vm272, %v240, 0
    %v313 = vsel %vm272, %v241, 0
    %v316 = vsel %vm272, %v242, 0
    %v319 = vsel %vm272, %v243, 0
    %v322 = vsel %vm272, %v244, 0
    %v325 = vsel %vm272, %v245, 0
    %v328 = vsel %vm272, %v246, 0
    %v331 = vsel %vm272, %v247, 0
    %v334 = vsel %vm272, %v248, 0
    %v337 = vsel %vm272, %v249, 0
    %v340 = vsel %vm272, %v250, 0
    %v343 = vsel %vm272, %v251, 0
    %v346 = vsel %vm272, %v252, 0
    %v349 = vsel %vm272, %v253, 0
    %v352 = vsel %vm272, %v254, 0
    %v355 = vsel %vm272, %v255, 0
    %v358 = vsel %vm272, %v256, 0
    %v361 = vsel %vm272, %v257, 0
    %v364 = vsel %vm272, %v258, 0
    %v367 = vsel %vm272, %v259, 0
    %369 = vmatpush.bf16.msra.mxu0 0
    %370 = vmatpush.bf16.msra.mxu0 0
    %371 = vmatpush.bf16.msra.mxu0 0
    %372 = vmatpush.bf16.msra.mxu0 0
    %373 = vmatpush.bf16.msra.mxu0 0
    %374 = vmatpush.bf16.msra.mxu0 0
    %375 = vmatpush.bf16.msra.mxu0 %v269
    %376 = vmatpush.bf16.msra.mxu0 %v268
    %377 = vmatmul.bf16.gmra.mxu0 %v274
    %v378 = vpop.f32.mrf.mxu0
    %v379 = vadd.f32 %v98, %v378
    %v380 = vpop.f32.mrf.mxu0
    %v381 = vadd.f32 %v98, %v380
    %382 = vmatmul.bf16.gmra.mxu0 %v277
    %v383 = vpop.f32.mrf.mxu0
    %v384 = vadd.f32 %v98, %v383
    %v385 = vpop.f32.mrf.mxu0
    %v386 = vadd.f32 %v98, %v385
    %387 = vmatmul.bf16.gmra.mxu0 %v280
    %v388 = vpop.f32.mrf.mxu0
    %v389 = vadd.f32 %v98, %v388
    %v390 = vpop.f32.mrf.mxu0
    %v391 = vadd.f32 %v98, %v390
    %392 = vmatmul.bf16.gmra.mxu0 %v283
    %v393 = vpop.f32.mrf.mxu0
    %v394 = vadd.f32 %v98, %v393
    %v395 = vpop.f32.mrf.mxu0
    %v396 = vadd.f32 %v98, %v395
    %397 = vmatmul.bf16.gmra.mxu0 %v286
    %v398 = vpop.f32.mrf.mxu0
    %v399 = vadd.f32 %v98, %v398
    %v400 = vpop.f32.mrf.mxu0
    %v401 = vadd.f32 %v98, %v400
    %402 = vmatmul.bf16.gmra.mxu0 %v289
    %v403 = vpop.f32.mrf.mxu0
    %v404 = vadd.f32 %v98, %v403
    %v405 = vpop.f32.mrf.mxu0
    %v406 = vadd.f32 %v98, %v405
    %407 = vmatmul.bf16.gmra.mxu0 %v292
    %v408 = vpop.f32.mrf.mxu0
    %v409 = vadd.f32 %v98, %v408
    %v410 = vpop.f32.mrf.mxu0
    %v411 = vadd.f32 %v98, %v410
    %412 = vmatmul.bf16.gmra.mxu0 %v295
    %v413 = vpop.f32.mrf.mxu0
    %v414 = vadd.f32 %v98, %v413
    %v415 = vpop.f32.mrf.mxu0
    %v416 = vadd.f32 %v98, %v415
    %417 = vmatmul.bf16.gmra.mxu0 %v298
    %v418 = vpop.f32.mrf.mxu0
    %v419 = vadd.f32 %v98, %v418
    %v420 = vpop.f32.mrf.mxu0
    %v421 = vadd.f32 %v98, %v420
    %422 = vmatmul.bf16.gmra.mxu0 %v301
    %v423 = vpop.f32.mrf.mxu0
    %v424 = vadd.f32 %v98, %v423
    %v425 = vpop.f32.mrf.mxu0
    %v426 = vadd.f32 %v98, %v425
    %427 = vmatmul.bf16.gmra.mxu0 %v304
    %v428 = vpop.f32.mrf.mxu0
    %v429 = vadd.f32 %v98, %v428
    %v430 = vpop.f32.mrf.mxu0
    %v431 = vadd.f32 %v98, %v430
    %432 = vmatmul.bf16.gmra.mxu0 %v307
    %v433 = vpop.f32.mrf.mxu0
    %v434 = vadd.f32 %v98, %v433
    %v435 = vpop.f32.mrf.mxu0
    %v436 = vadd.f32 %v98, %v435
    %437 = vmatmul.bf16.gmra.mxu0 %v310
    %v438 = vpop.f32.mrf.mxu0
    %v439 = vadd.f32 %v98, %v438
    %v440 = vpop.f32.mrf.mxu0
    %v441 = vadd.f32 %v98, %v440
    %442 = vmatmul.bf16.gmra.mxu0 %v313
    %v443 = vpop.f32.mrf.mxu0
    %v444 = vadd.f32 %v98, %v443
    %v445 = vpop.f32.mrf.mxu0
    %v446 = vadd.f32 %v98, %v445
    %447 = vmatmul.bf16.gmra.mxu0 %v316
    %v448 = vpop.f32.mrf.mxu0
    %v449 = vadd.f32 %v98, %v448
    %v450 = vpop.f32.mrf.mxu0
    %v451 = vadd.f32 %v98, %v450
    %452 = vmatmul.bf16.gmra.mxu0 %v319
    %v453 = vpop.f32.mrf.mxu0
    %v454 = vadd.f32 %v98, %v453
    %v455 = vpop.f32.mrf.mxu0
    %v456 = vadd.f32 %v98, %v455
    %457 = vmatmul.bf16.gmra.mxu0 %v322
    %v458 = vpop.f32.mrf.mxu0
    %v459 = vadd.f32 %v98, %v458
    %v460 = vpop.f32.mrf.mxu0
    %v461 = vadd.f32 %v98, %v460
    %462 = vmatmul.bf16.gmra.mxu0 %v325
    %v463 = vpop.f32.mrf.mxu0
    %v464 = vadd.f32 %v98, %v463
    %v465 = vpop.f32.mrf.mxu0
    %v466 = vadd.f32 %v98, %v465
    %467 = vmatmul.bf16.gmra.mxu0 %v328
    %v468 = vpop.f32.mrf.mxu0
    %v469 = vadd.f32 %v98, %v468
    %v470 = vpop.f32.mrf.mxu0
    %v471 = vadd.f32 %v98, %v470
    %472 = vmatmul.bf16.gmra.mxu0 %v331
    %v473 = vpop.f32.mrf.mxu0
    %v474 = vadd.f32 %v98, %v473
    %v475 = vpop.f32.mrf.mxu0
    %v476 = vadd.f32 %v98, %v475
    %477 = vmatmul.bf16.gmra.mxu0 %v334
    %v478 = vpop.f32.mrf.mxu0
    %v479 = vadd.f32 %v98, %v478
    %v480 = vpop.f32.mrf.mxu0
    %v481 = vadd.f32 %v98, %v480
    %482 = vmatmul.bf16.gmra.mxu0 %v337
    %v483 = vpop.f32.mrf.mxu0
    %v484 = vadd.f32 %v98, %v483
    %v485 = vpop.f32.mrf.mxu0
    %v486 = vadd.f32 %v98, %v485
    %487 = vmatmul.bf16.gmra.mxu0 %v340
    %v488 = vpop.f32.mrf.mxu0
    %v489 = vadd.f32 %v98, %v488
    %v490 = vpop.f32.mrf.mxu0
    %v491 = vadd.f32 %v98, %v490
    %492 = vmatmul.bf16.gmra.mxu0 %v343
    %v493 = vpop.f32.mrf.mxu0
    %v494 = vadd.f32 %v98, %v493
    %v495 = vpop.f32.mrf.mxu0
    %v496 = vadd.f32 %v98, %v495
    %497 = vmatmul.bf16.gmra.mxu0 %v346
    %v498 = vpop.f32.mrf.mxu0
    %v499 = vadd.f32 %v98, %v498
    %v500 = vpop.f32.mrf.mxu0
    %v501 = vadd.f32 %v98, %v500
    %502 = vmatmul.bf16.gmra.mxu0 %v349
    %v503 = vpop.f32.mrf.mxu0
    %v504 = vadd.f32 %v98, %v503
    %v505 = vpop.f32.mrf.mxu0
    %v506 = vadd.f32 %v98, %v505
    %507 = vmatmul.bf16.gmra.mxu0 %v352
    %v508 = vpop.f32.mrf.mxu0
    %v509 = vadd.f32 %v98, %v508
    %v510 = vpop.f32.mrf.mxu0
    %v511 = vadd.f32 %v98, %v510
    %512 = vmatmul.bf16.gmra.mxu0 %v355
    %v513 = vpop.f32.mrf.mxu0
    %v514 = vadd.f32 %v98, %v513
    %v515 = vpop.f32.mrf.mxu0
    %v516 = vadd.f32 %v98, %v515
    %517 = vmatmul.bf16.gmra.mxu0 %v358
    %v518 = vpop.f32.mrf.mxu0
    %v519 = vadd.f32 %v98, %v518
    %v520 = vpop.f32.mrf.mxu0
    %v521 = vadd.f32 %v98, %v520
    %522 = vmatmul.bf16.gmra.mxu0 %v361
    %v523 = vpop.f32.mrf.mxu0
    %v524 = vadd.f32 %v98, %v523
    %v525 = vpop.f32.mrf.mxu0
    %v526 = vadd.f32 %v98, %v525
    %527 = vmatmul.bf16.gmra.mxu0 %v364
    %v528 = vpop.f32.mrf.mxu0
    %v529 = vadd.f32 %v98, %v528
    %v530 = vpop.f32.mrf.mxu0
    %v531 = vadd.f32 %v98, %v530
    %532 = vmatmul.bf16.gmra.mxu0 %v367
    %v533 = vpop.f32.mrf.mxu0
    %v534 = vadd.f32 %v98, %v533
    %v535 = vpop.f32.mrf.mxu0
    %v536 = vadd.f32 %v98, %v535
    %537 = vdwg.mxu0
    %v538 = vmax.f32 %v379, 0.0
    %v539 = vmax.f32 %v381, 0.0
    %v540 = vmax.f32 %v384, 0.0
    %v541 = vmax.f32 %v386, 0.0
    %v542 = vmax.f32 %v389, 0.0
    %v543 = vmax.f32 %v391, 0.0
    %v544 = vmax.f32 %v394, 0.0
    %v545 = vmax.f32 %v396, 0.0
    %v546 = vmax.f32 %v399, 0.0
    %v547 = vmax.f32 %v401, 0.0
    %v548 = vmax.f32 %v404, 0.0
    %v549 = vmax.f32 %v406, 0.0
    %v550 = vmax.f32 %v409, 0.0
    %v551 = vmax.f32 %v411, 0.0
    %v552 = vmax.f32 %v414, 0.0
    %v553 = vmax.f32 %v416, 0.0
    %v554 = vmax.f32 %v419, 0.0
    %v555 = vmax.f32 %v421, 0.0
    %v556 = vmax.f32 %v424, 0.0
    %v557 = vmax.f32 %v426, 0.0
    %v558 = vmax.f32 %v429, 0.0
    %v559 = vmax.f32 %v431, 0.0
    %v560 = vmax.f32 %v434, 0.0
    %v561 = vmax.f32 %v436, 0.0
    %v562 = vmax.f32 %v439, 0.0
    %v563 = vmax.f32 %v441, 0.0
    %v564 = vmax.f32 %v444, 0.0
    %v565 = vmax.f32 %v446, 0.0
    %v566 = vmax.f32 %v449, 0.0
    %v567 = vmax.f32 %v451, 0.0
    %v568 = vmax.f32 %v454, 0.0
    %v569 = vmax.f32 %v456, 0.0
    %v570 = vmax.f32 %v459, 0.0
    %v571 = vmax.f32 %v461, 0.0
    %v572 = vmax.f32 %v464, 0.0
    %v573 = vmax.f32 %v466, 0.0
    %v574 = vmax.f32 %v469, 0.0
    %v575 = vmax.f32 %v471, 0.0
    %v576 = vmax.f32 %v474, 0.0
    %v577 = vmax.f32 %v476, 0.0
    %v578 = vmax.f32 %v479, 0.0
    %v579 = vmax.f32 %v481, 0.0
    %v580 = vmax.f32 %v484, 0.0
    %v581 = vmax.f32 %v486, 0.0
    %v582 = vmax.f32 %v489, 0.0
    %v583 = vmax.f32 %v491, 0.0
    %v584 = vmax.f32 %v494, 0.0
    %v585 = vmax.f32 %v496, 0.0
    %v586 = vmax.f32 %v499, 0.0
    %v587 = vmax.f32 %v501, 0.0
    %v588 = vmax.f32 %v504, 0.0
    %v589 = vmax.f32 %v506, 0.0
    %v590 = vmax.f32 %v509, 0.0
    %v591 = vmax.f32 %v511, 0.0
    %v592 = vmax.f32 %v514, 0.0
    %v593 = vmax.f32 %v516, 0.0
    %v594 = vmax.f32 %v519, 0.0
    %v595 = vmax.f32 %v521, 0.0
    %v596 = vmax.f32 %v524, 0.0
    %v597 = vmax.f32 %v526, 0.0
    %v598 = vmax.f32 %v529, 0.0
    %v599 = vmax.f32 %v531, 0.0
    %v600 = vmax.f32 %v534, 0.0
    %v601 = vmax.f32 %v536, 0.0
    %v602 = vpack.c.bf16 %v538, %v538
    %v603 = vpack.c.bf16 %v539, %v539
    %v604 = vpack.c.bf16 %v540, %v540
    %v605 = vpack.c.bf16 %v541, %v541
    %v606 = vpack.c.bf16 %v542, %v542
    %v607 = vpack.c.bf16 %v543, %v543
    %v608 = vpack.c.bf16 %v544, %v544
    %v609 = vpack.c.bf16 %v545, %v545
    %v610 = vpack.c.bf16 %v546, %v546
    %v611 = vpack.c.bf16 %v547, %v547
    %v612 = vpack.c.bf16 %v548, %v548
    %v613 = vpack.c.bf16 %v549, %v549
    %v614 = vpack.c.bf16 %v550, %v550
    %v615 = vpack.c.bf16 %v551, %v551
    %v616 = vpack.c.bf16 %v552, %v552
    %v617 = vpack.c.bf16 %v553, %v553
    %v618 = vpack.c.bf16 %v554, %v554
    %v619 = vpack.c.bf16 %v555, %v555
    %v620 = vpack.c.bf16 %v556, %v556
    %v621 = vpack.c.bf16 %v557, %v557
    %v622 = vpack.c.bf16 %v558, %v558
    %v623 = vpack.c.bf16 %v559, %v559
    %v624 = vpack.c.bf16 %v560, %v560
    %v625 = vpack.c.bf16 %v561, %v561
    %v626 = vpack.c.bf16 %v562, %v562
    %v627 = vpack.c.bf16 %v563, %v563
    %v628 = vpack.c.bf16 %v564, %v564
    %v629 = vpack.c.bf16 %v565, %v565
    %v630 = vpack.c.bf16 %v566, %v566
    %v631 = vpack.c.bf16 %v567, %v567
    %v632 = vpack.c.bf16 %v568, %v568
    %v633 = vpack.c.bf16 %v569, %v569
    %v634 = vpack.c.bf16 %v570, %v570
    %v635 = vpack.c.bf16 %v571, %v571
    %v636 = vpack.c.bf16 %v572, %v572
    %v637 = vpack.c.bf16 %v573, %v573
    %v638 = vpack.c.bf16 %v574, %v574
    %v639 = vpack.c.bf16 %v575, %v575
    %v640 = vpack.c.bf16 %v576, %v576
    %v641 = vpack.c.bf16 %v577, %v577
    %v642 = vpack.c.bf16 %v578, %v578
    %v643 = vpack.c.bf16 %v579, %v579
    %v644 = vpack.c.bf16 %v580, %v580
    %v645 = vpack.c.bf16 %v581, %v581
    %v646 = vpack.c.bf16 %v582, %v582
    %v647 = vpack.c.bf16 %v583, %v583
    %v648 = vpack.c.bf16 %v584, %v584
    %v649 = vpack.c.bf16 %v585, %v585
    %v650 = vpack.c.bf16 %v586, %v586
    %v651 = vpack.c.bf16 %v587, %v587
    %v652 = vpack.c.bf16 %v588, %v588
    %v653 = vpack.c.bf16 %v589, %v589
    %v654 = vpack.c.bf16 %v590, %v590
    %v655 = vpack.c.bf16 %v591, %v591
    %v656 = vpack.c.bf16 %v592, %v592
    %v657 = vpack.c.bf16 %v593, %v593
    %v658 = vpack.c.bf16 %v594, %v594
    %v659 = vpack.c.bf16 %v595, %v595
    %v660 = vpack.c.bf16 %v596, %v596
    %v661 = vpack.c.bf16 %v597, %v597
    %v662 = vpack.c.bf16 %v598, %v598
    %v663 = vpack.c.bf16 %v599, %v599
    %v664 = vpack.c.bf16 %v600, %v600
    %v665 = vpack.c.bf16 %v601, %v601
    %v730 = vunpack.c.l.b16 %v602
    %v731 = vunpack.c.l.b16 %v603
    %v732 = vunpack.c.l.b16 %v604
    %v733 = vunpack.c.l.b16 %v605
    %v734 = vunpack.c.l.b16 %v606
    %v735 = vunpack.c.l.b16 %v607
    %v736 = vunpack.c.l.b16 %v608
    %v737 = vunpack.c.l.b16 %v609
    %v738 = vunpack.c.l.b16 %v610
    %v739 = vunpack.c.l.b16 %v611
    %v740 = vunpack.c.l.b16 %v612
    %v741 = vunpack.c.l.b16 %v613
    %v742 = vunpack.c.l.b16 %v614
    %v743 = vunpack.c.l.b16 %v615
    %v744 = vunpack.c.l.b16 %v616
    %v745 = vunpack.c.l.b16 %v617
    %v746 = vunpack.c.l.b16 %v618
    %v747 = vunpack.c.l.b16 %v619
    %v748 = vunpack.c.l.b16 %v620
    %v749 = vunpack.c.l.b16 %v621
    %v750 = vunpack.c.l.b16 %v622
    %v751 = vunpack.c.l.b16 %v623
    %v752 = vunpack.c.l.b16 %v624
    %v753 = vunpack.c.l.b16 %v625
    %v754 = vunpack.c.l.b16 %v626
    %v755 = vunpack.c.l.b16 %v627
    %v756 = vunpack.c.l.b16 %v628
    %v757 = vunpack.c.l.b16 %v629
    %v758 = vunpack.c.l.b16 %v630
    %v759 = vunpack.c.l.b16 %v631
    %v760 = vunpack.c.l.b16 %v632
    %v761 = vunpack.c.l.b16 %v633
    %v762 = vunpack.c.l.b16 %v634
    %v763 = vunpack.c.l.b16 %v635
    %v764 = vunpack.c.l.b16 %v636
    %v765 = vunpack.c.l.b16 %v637
    %v766 = vunpack.c.l.b16 %v638
    %v767 = vunpack.c.l.b16 %v639
    %v768 = vunpack.c.l.b16 %v640
    %v769 = vunpack.c.l.b16 %v641
    %v770 = vunpack.c.l.b16 %v642
    %v771 = vunpack.c.l.b16 %v643
    %v772 = vunpack.c.l.b16 %v644
    %v773 = vunpack.c.l.b16 %v645
    %v774 = vunpack.c.l.b16 %v646
    %v775 = vunpack.c.l.b16 %v647
    %v776 = vunpack.c.l.b16 %v648
    %v777 = vunpack.c.l.b16 %v649
    %v778 = vunpack.c.l.b16 %v650
    %v779 = vunpack.c.l.b16 %v651
    %v780 = vunpack.c.l.b16 %v652
    %v781 = vunpack.c.l.b16 %v653
    %v782 = vunpack.c.l.b16 %v654
    %v783 = vunpack.c.l.b16 %v655
    %v784 = vunpack.c.l.b16 %v656
    %v785 = vunpack.c.l.b16 %v657
    %v786 = vunpack.c.l.b16 %v658
    %v787 = vunpack.c.l.b16 %v659
    %v788 = vunpack.c.l.b16 %v660
    %v789 = vunpack.c.l.b16 %v661
    %v790 = vunpack.c.l.b16 %v662
    %v791 = vunpack.c.l.b16 %v663
    %v792 = vunpack.c.l.b16 %v664
    %v793 = vunpack.c.l.b16 %v665
    %v794 = vpack.c.b16 %v731, %v730
    %v795 = vpack.c.b16 %v733, %v732
    %v796 = vpack.c.b16 %v735, %v734
    %v797 = vpack.c.b16 %v737, %v736
    %v798 = vpack.c.b16 %v739, %v738
    %v799 = vpack.c.b16 %v741, %v740
    %v800 = vpack.c.b16 %v743, %v742
    %v801 = vpack.c.b16 %v745, %v744
    %v802 = vpack.c.b16 %v747, %v746
    %v803 = vpack.c.b16 %v749, %v748
    %v804 = vpack.c.b16 %v751, %v750
    %v805 = vpack.c.b16 %v753, %v752
    %v806 = vpack.c.b16 %v755, %v754
    %v807 = vpack.c.b16 %v757, %v756
    %v808 = vpack.c.b16 %v759, %v758
    %v809 = vpack.c.b16 %v761, %v760
    %v810 = vpack.c.b16 %v763, %v762
    %v811 = vpack.c.b16 %v765, %v764
    %v812 = vpack.c.b16 %v767, %v766
    %v813 = vpack.c.b16 %v769, %v768
    %v814 = vpack.c.b16 %v771, %v770
    %v815 = vpack.c.b16 %v773, %v772
    %v816 = vpack.c.b16 %v775, %v774
    %v817 = vpack.c.b16 %v777, %v776
    %v818 = vpack.c.b16 %v779, %v778
    %v819 = vpack.c.b16 %v781, %v780
    %v820 = vpack.c.b16 %v783, %v782
    %v821 = vpack.c.b16 %v785, %v784
    %v822 = vpack.c.b16 %v787, %v786
    %v823 = vpack.c.b16 %v789, %v788
    %v824 = vpack.c.b16 %v791, %v790
    %v825 = vpack.c.b16 %v793, %v792
    %v827 = vshrl.u32 %v794, 16
    %v829 = vrot.slane %v827, 7
    %v830 = vshll.u32 %v794, 16
    %v832 = vor.u32 %v829, %v830
    %v834 = vshrl.u32 %v795, 16
    %v836 = vrot.slane %v834, 7
    %v837 = vshll.u32 %v795, 16
    %v839 = vor.u32 %v836, %v837
    %v841 = vshrl.u32 %v796, 16
    %v843 = vrot.slane %v841, 7
    %v844 = vshll.u32 %v796, 16
    %v846 = vor.u32 %v843, %v844
    %v848 = vshrl.u32 %v797, 16
    %v850 = vrot.slane %v848, 7
    %v851 = vshll.u32 %v797, 16
    %v853 = vor.u32 %v850, %v851
    %v855 = vshrl.u32 %v798, 16
    %v857 = vrot.slane %v855, 7
    %v858 = vshll.u32 %v798, 16
    %v860 = vor.u32 %v857, %v858
    %v862 = vshrl.u32 %v799, 16
    %v864 = vrot.slane %v862, 7
    %v865 = vshll.u32 %v799, 16
    %v867 = vor.u32 %v864, %v865
    %v869 = vshrl.u32 %v800, 16
    %v871 = vrot.slane %v869, 7
    %v872 = vshll.u32 %v800, 16
    %v874 = vor.u32 %v871, %v872
    %v876 = vshrl.u32 %v801, 16
    %v878 = vrot.slane %v876, 7
    %v879 = vshll.u32 %v801, 16
    %v881 = vor.u32 %v878, %v879
    %v883 = vshrl.u32 %v802, 16
    %v885 = vrot.slane %v883, 7
    %v886 = vshll.u32 %v802, 16
    %v888 = vor.u32 %v885, %v886
    %v890 = vshrl.u32 %v803, 16
    %v892 = vrot.slane %v890, 7
    %v893 = vshll.u32 %v803, 16
    %v895 = vor.u32 %v892, %v893
    %v897 = vshrl.u32 %v804, 16
    %v899 = vrot.slane %v897, 7
    %v900 = vshll.u32 %v804, 16
    %v902 = vor.u32 %v899, %v900
    %v904 = vshrl.u32 %v805, 16
    %v906 = vrot.slane %v904, 7
    %v907 = vshll.u32 %v805, 16
    %v909 = vor.u32 %v906, %v907
    %v911 = vshrl.u32 %v806, 16
    %v913 = vrot.slane %v911, 7
    %v914 = vshll.u32 %v806, 16
    %v916 = vor.u32 %v913, %v914
    %v918 = vshrl.u32 %v807, 16
    %v920 = vrot.slane %v918, 7
    %v921 = vshll.u32 %v807, 16
    %v923 = vor.u32 %v920, %v921
    %v925 = vshrl.u32 %v808, 16
    %v927 = vrot.slane %v925, 7
    %v928 = vshll.u32 %v808, 16
    %v930 = vor.u32 %v927, %v928
    %v932 = vshrl.u32 %v809, 16
    %v934 = vrot.slane %v932, 7
    %v935 = vshll.u32 %v809, 16
    %v937 = vor.u32 %v934, %v935
    %v939 = vshrl.u32 %v810, 16
    %v941 = vrot.slane %v939, 7
    %v942 = vshll.u32 %v810, 16
    %v944 = vor.u32 %v941, %v942
    %v946 = vshrl.u32 %v811, 16
    %v948 = vrot.slane %v946, 7
    %v949 = vshll.u32 %v811, 16
    %v951 = vor.u32 %v948, %v949
    %v953 = vshrl.u32 %v812, 16
    %v955 = vrot.slane %v953, 7
    %v956 = vshll.u32 %v812, 16
    %v958 = vor.u32 %v955, %v956
    %v960 = vshrl.u32 %v813, 16
    %v962 = vrot.slane %v960, 7
    %v963 = vshll.u32 %v813, 16
    %v965 = vor.u32 %v962, %v963
    %v967 = vshrl.u32 %v814, 16
    %v969 = vrot.slane %v967, 7
    %v970 = vshll.u32 %v814, 16
    %v972 = vor.u32 %v969, %v970
    %v974 = vshrl.u32 %v815, 16
    %v976 = vrot.slane %v974, 7
    %v977 = vshll.u32 %v815, 16
    %v979 = vor.u32 %v976, %v977
    %v981 = vshrl.u32 %v816, 16
    %v983 = vrot.slane %v981, 7
    %v984 = vshll.u32 %v816, 16
    %v986 = vor.u32 %v983, %v984
    %v988 = vshrl.u32 %v817, 16
    %v990 = vrot.slane %v988, 7
    %v991 = vshll.u32 %v817, 16
    %v993 = vor.u32 %v990, %v991
    %v995 = vshrl.u32 %v818, 16
    %v997 = vrot.slane %v995, 7
    %v998 = vshll.u32 %v818, 16
    %v1000 = vor.u32 %v997, %v998
    %v1002 = vshrl.u32 %v819, 16
    %v1004 = vrot.slane %v1002, 7
    %v1005 = vshll.u32 %v819, 16
    %v1007 = vor.u32 %v1004, %v1005
    %v1009 = vshrl.u32 %v820, 16
    %v1011 = vrot.slane %v1009, 7
    %v1012 = vshll.u32 %v820, 16
    %v1014 = vor.u32 %v1011, %v1012
    %v1016 = vshrl.u32 %v821, 16
    %v1018 = vrot.slane %v1016, 7
    %v1019 = vshll.u32 %v821, 16
    %v1021 = vor.u32 %v1018, %v1019
    %v1023 = vshrl.u32 %v822, 16
    %v1025 = vrot.slane %v1023, 7
    %v1026 = vshll.u32 %v822, 16
    %v1028 = vor.u32 %v1025, %v1026
    %v1030 = vshrl.u32 %v823, 16
    %v1032 = vrot.slane %v1030, 7
    %v1033 = vshll.u32 %v823, 16
    %v1035 = vor.u32 %v1032, %v1033
    %v1037 = vshrl.u32 %v824, 16
    %v1039 = vrot.slane %v1037, 7
    %v1040 = vshll.u32 %v824, 16
    %v1042 = vor.u32 %v1039, %v1040
    %v1044 = vshrl.u32 %v825, 16
    %v1046 = vrot.slane %v1044, 7
    %v1047 = vshll.u32 %v825, 16
    %v1049 = vor.u32 %v1046, %v1047
    %vm1114 = vcmask 1040384
    %vm1115 = vsmask.f32 256
    %vm1116 = vmand %vm1114, %vm1115
    %v1117 = vsel %vm1116, 0, %v832
    %v1118 = vsel %vm1116, 0, %v839
    %v1119 = vsel %vm1116, 0, %v846
    %v1120 = vsel %vm1116, 0, %v853
    %v1121 = vsel %vm1116, 0, %v860
    %v1122 = vsel %vm1116, 0, %v867
    %v1123 = vsel %vm1116, 0, %v874
    %v1124 = vsel %vm1116, 0, %v881
    %v1125 = vsel %vm1116, 0, %v888
    %v1126 = vsel %vm1116, 0, %v895
    %v1127 = vsel %vm1116, 0, %v902
    %v1128 = vsel %vm1116, 0, %v909
    %v1129 = vsel %vm1116, 0, %v916
    %v1130 = vsel %vm1116, 0, %v923
    %v1131 = vsel %vm1116, 0, %v930
    %v1132 = vsel %vm1116, 0, %v937
    %v1133 = vsel %vm1116, 0, %v944
    %v1134 = vsel %vm1116, 0, %v951
    %v1135 = vsel %vm1116, 0, %v958
    %v1136 = vsel %vm1116, 0, %v965
    %v1137 = vsel %vm1116, 0, %v972
    %v1138 = vsel %vm1116, 0, %v979
    %v1139 = vsel %vm1116, 0, %v986
    %v1140 = vsel %vm1116, 0, %v993
    %v1141 = vsel %vm1116, 0, %v1000
    %v1142 = vsel %vm1116, 0, %v1007
    %v1143 = vsel %vm1116, 0, %v1014
    %v1144 = vsel %vm1116, 0, %v1021
    %v1145 = vsel %vm1116, 0, %v1028
    %v1146 = vsel %vm1116, 0, %v1035
    %v1147 = vsel %vm1116, 0, %v1042
    %v1148 = vsel %vm1116, 0, %v1049
    %v1149 = vsel %vm1116, %v829, 0
    %v1150 = vsel %vm1116, %v836, 0
    %v1151 = vsel %vm1116, %v843, 0
    %v1152 = vsel %vm1116, %v850, 0
    %v1153 = vsel %vm1116, %v857, 0
    %v1154 = vsel %vm1116, %v864, 0
    %v1155 = vsel %vm1116, %v871, 0
    %v1156 = vsel %vm1116, %v878, 0
    %v1157 = vsel %vm1116, %v885, 0
    %v1158 = vsel %vm1116, %v892, 0
    %v1159 = vsel %vm1116, %v899, 0
    %v1160 = vsel %vm1116, %v906, 0
    %v1161 = vsel %vm1116, %v913, 0
    %v1162 = vsel %vm1116, %v920, 0
    %v1163 = vsel %vm1116, %v927, 0
    %v1164 = vsel %vm1116, %v934, 0
    %v1165 = vsel %vm1116, %v941, 0
    %v1166 = vsel %vm1116, %v948, 0
    %v1167 = vsel %vm1116, %v955, 0
    %v1168 = vsel %vm1116, %v962, 0
    %v1169 = vsel %vm1116, %v969, 0
    %v1170 = vsel %vm1116, %v976, 0
    %v1171 = vsel %vm1116, %v983, 0
    %v1172 = vsel %vm1116, %v990, 0
    %v1173 = vsel %vm1116, %v997, 0
    %v1174 = vsel %vm1116, %v1004, 0
    %v1175 = vsel %vm1116, %v1011, 0
    %v1176 = vsel %vm1116, %v1018, 0
    %v1177 = vsel %vm1116, %v1025, 0
    %v1178 = vsel %vm1116, %v1032, 0
    %v1179 = vsel %vm1116, %v1039, 0
    %v1180 = vsel %vm1116, %v1046, 0
    %vm1181 = vsmask.f32 7424
    %v1183 = vshrl.u32 0, 16
    %v1185 = vshll.u32 0, 16
    %v1187 = vrot.slane %v1185, 1
    %v1188 = vor.u32 %v1183, %v1187
    %v1189 = vsel %vm1181, %v1188, %v1187
    %v1191 = vshrl.u32 %v1117, 16
    %v1193 = vshll.u32 %v1117, 16
    %v1195 = vrot.slane %v1193, 1
    %v1196 = vor.u32 %v1191, %v1195
    %v1198 = vshll.u32 %v1149, 16
    %v1200 = vrot.slane %v1198, 1
    %v1201 = vsel %vm1181, %v1196, %v1200
    %v1203 = vshrl.u32 %v1118, 16
    %v1205 = vshll.u32 %v1118, 16
    %v1207 = vrot.slane %v1205, 1
    %v1208 = vor.u32 %v1203, %v1207
    %v1210 = vshll.u32 %v1150, 16
    %v1212 = vrot.slane %v1210, 1
    %v1213 = vsel %vm1181, %v1208, %v1212
    %v1215 = vshrl.u32 %v1119, 16
    %v1217 = vshll.u32 %v1119, 16
    %v1219 = vrot.slane %v1217, 1
    %v1220 = vor.u32 %v1215, %v1219
    %v1222 = vshll.u32 %v1151, 16
    %v1224 = vrot.slane %v1222, 1
    %v1225 = vsel %vm1181, %v1220, %v1224
    %v1227 = vshrl.u32 %v1120, 16
    %v1229 = vshll.u32 %v1120, 16
    %v1231 = vrot.slane %v1229, 1
    %v1232 = vor.u32 %v1227, %v1231
    %v1234 = vshll.u32 %v1152, 16
    %v1236 = vrot.slane %v1234, 1
    %v1237 = vsel %vm1181, %v1232, %v1236
    %v1239 = vshrl.u32 %v1121, 16
    %v1241 = vshll.u32 %v1121, 16
    %v1243 = vrot.slane %v1241, 1
    %v1244 = vor.u32 %v1239, %v1243
    %v1246 = vshll.u32 %v1153, 16
    %v1248 = vrot.slane %v1246, 1
    %v1249 = vsel %vm1181, %v1244, %v1248
    %v1251 = vshrl.u32 %v1122, 16
    %v1253 = vshll.u32 %v1122, 16
    %v1255 = vrot.slane %v1253, 1
    %v1256 = vor.u32 %v1251, %v1255
    %v1258 = vshll.u32 %v1154, 16
    %v1260 = vrot.slane %v1258, 1
    %v1261 = vsel %vm1181, %v1256, %v1260
    %v1263 = vshrl.u32 %v1123, 16
    %v1265 = vshll.u32 %v1123, 16
    %v1267 = vrot.slane %v1265, 1
    %v1268 = vor.u32 %v1263, %v1267
    %v1270 = vshll.u32 %v1155, 16
    %v1272 = vrot.slane %v1270, 1
    %v1273 = vsel %vm1181, %v1268, %v1272
    %v1275 = vshrl.u32 %v1124, 16
    %v1277 = vshll.u32 %v1124, 16
    %v1279 = vrot.slane %v1277, 1
    %v1280 = vor.u32 %v1275, %v1279
    %v1282 = vshll.u32 %v1156, 16
    %v1284 = vrot.slane %v1282, 1
    %v1285 = vsel %vm1181, %v1280, %v1284
    %v1287 = vshrl.u32 %v1125, 16
    %v1289 = vshll.u32 %v1125, 16
    %v1291 = vrot.slane %v1289, 1
    %v1292 = vor.u32 %v1287, %v1291
    %v1294 = vshll.u32 %v1157, 16
    %v1296 = vrot.slane %v1294, 1
    %v1297 = vsel %vm1181, %v1292, %v1296
    %v1299 = vshrl.u32 %v1126, 16
    %v1301 = vshll.u32 %v1126, 16
    %v1303 = vrot.slane %v1301, 1
    %v1304 = vor.u32 %v1299, %v1303
    %v1306 = vshll.u32 %v1158, 16
    %v1308 = vrot.slane %v1306, 1
    %v1309 = vsel %vm1181, %v1304, %v1308
    %v1311 = vshrl.u32 %v1127, 16
    %v1313 = vshll.u32 %v1127, 16
    %v1315 = vrot.slane %v1313, 1
    %v1316 = vor.u32 %v1311, %v1315
    %v1318 = vshll.u32 %v1159, 16
    %v1320 = vrot.slane %v1318, 1
    %v1321 = vsel %vm1181, %v1316, %v1320
    %v1323 = vshrl.u32 %v1128, 16
    %v1325 = vshll.u32 %v1128, 16
    %v1327 = vrot.slane %v1325, 1
    %v1328 = vor.u32 %v1323, %v1327
    %v1330 = vshll.u32 %v1160, 16
    %v1332 = vrot.slane %v1330, 1
    %v1333 = vsel %vm1181, %v1328, %v1332
    %v1335 = vshrl.u32 %v1129, 16
    %v1337 = vshll.u32 %v1129, 16
    %v1339 = vrot.slane %v1337, 1
    %v1340 = vor.u32 %v1335, %v1339
    %v1342 = vshll.u32 %v1161, 16
    %v1344 = vrot.slane %v1342, 1
    %v1345 = vsel %vm1181, %v1340, %v1344
    %v1347 = vshrl.u32 %v1130, 16
    %v1349 = vshll.u32 %v1130, 16
    %v1351 = vrot.slane %v1349, 1
    %v1352 = vor.u32 %v1347, %v1351
    %v1354 = vshll.u32 %v1162, 16
    %v1356 = vrot.slane %v1354, 1
    %v1357 = vsel %vm1181, %v1352, %v1356
    %v1359 = vshrl.u32 %v1131, 16
    %v1361 = vshll.u32 %v1131, 16
    %v1363 = vrot.slane %v1361, 1
    %v1364 = vor.u32 %v1359, %v1363
    %v1366 = vshll.u32 %v1163, 16
    %v1368 = vrot.slane %v1366, 1
    %v1369 = vsel %vm1181, %v1364, %v1368
    %v1371 = vshrl.u32 %v1133, 16
    %v1373 = vshll.u32 %v1133, 16
    %v1375 = vrot.slane %v1373, 1
    %v1376 = vor.u32 %v1371, %v1375
    %v1378 = vshll.u32 %v1165, 16
    %v1380 = vrot.slane %v1378, 1
    %v1381 = vsel %vm1181, %v1376, %v1380
    %v1383 = vshrl.u32 %v1134, 16
    %v1385 = vshll.u32 %v1134, 16
    %v1387 = vrot.slane %v1385, 1
    %v1388 = vor.u32 %v1383, %v1387
    %v1390 = vshll.u32 %v1166, 16
    %v1392 = vrot.slane %v1390, 1
    %v1393 = vsel %vm1181, %v1388, %v1392
    %v1395 = vshrl.u32 %v1135, 16
    %v1397 = vshll.u32 %v1135, 16
    %v1399 = vrot.slane %v1397, 1
    %v1400 = vor.u32 %v1395, %v1399
    %v1402 = vshll.u32 %v1167, 16
    %v1404 = vrot.slane %v1402, 1
    %v1405 = vsel %vm1181, %v1400, %v1404
    %v1407 = vshrl.u32 %v1136, 16
    %v1409 = vshll.u32 %v1136, 16
    %v1411 = vrot.slane %v1409, 1
    %v1412 = vor.u32 %v1407, %v1411
    %v1414 = vshll.u32 %v1168, 16
    %v1416 = vrot.slane %v1414, 1
    %v1417 = vsel %vm1181, %v1412, %v1416
    %v1419 = vshrl.u32 %v1137, 16
    %v1421 = vshll.u32 %v1137, 16
    %v1423 = vrot.slane %v1421, 1
    %v1424 = vor.u32 %v1419, %v1423
    %v1426 = vshll.u32 %v1169, 16
    %v1428 = vrot.slane %v1426, 1
    %v1429 = vsel %vm1181, %v1424, %v1428
    %v1431 = vshrl.u32 %v1138, 16
    %v1433 = vshll.u32 %v1138, 16
    %v1435 = vrot.slane %v1433, 1
    %v1436 = vor.u32 %v1431, %v1435
    %v1438 = vshll.u32 %v1170, 16
    %v1440 = vrot.slane %v1438, 1
    %v1441 = vsel %vm1181, %v1436, %v1440
    %v1443 = vshrl.u32 %v1139, 16
    %v1445 = vshll.u32 %v1139, 16
    %v1447 = vrot.slane %v1445, 1
    %v1448 = vor.u32 %v1443, %v1447
    %v1450 = vshll.u32 %v1171, 16
    %v1452 = vrot.slane %v1450, 1
    %v1453 = vsel %vm1181, %v1448, %v1452
    %v1455 = vshrl.u32 %v1140, 16
    %v1457 = vshll.u32 %v1140, 16
    %v1459 = vrot.slane %v1457, 1
    %v1460 = vor.u32 %v1455, %v1459
    %v1462 = vshll.u32 %v1172, 16
    %v1464 = vrot.slane %v1462, 1
    %v1465 = vsel %vm1181, %v1460, %v1464
    %v1467 = vshrl.u32 %v1141, 16
    %v1469 = vshll.u32 %v1141, 16
    %v1471 = vrot.slane %v1469, 1
    %v1472 = vor.u32 %v1467, %v1471
    %v1474 = vshll.u32 %v1173, 16
    %v1476 = vrot.slane %v1474, 1
    %v1477 = vsel %vm1181, %v1472, %v1476
    %v1479 = vshrl.u32 %v1142, 16
    %v1481 = vshll.u32 %v1142, 16
    %v1483 = vrot.slane %v1481, 1
    %v1484 = vor.u32 %v1479, %v1483
    %v1486 = vshll.u32 %v1174, 16
    %v1488 = vrot.slane %v1486, 1
    %v1489 = vsel %vm1181, %v1484, %v1488
    %v1491 = vshrl.u32 %v1143, 16
    %v1493 = vshll.u32 %v1143, 16
    %v1495 = vrot.slane %v1493, 1
    %v1496 = vor.u32 %v1491, %v1495
    %v1498 = vshll.u32 %v1175, 16
    %v1500 = vrot.slane %v1498, 1
    %v1501 = vsel %vm1181, %v1496, %v1500
    %v1503 = vshrl.u32 %v1144, 16
    %v1505 = vshll.u32 %v1144, 16
    %v1507 = vrot.slane %v1505, 1
    %v1508 = vor.u32 %v1503, %v1507
    %v1510 = vshll.u32 %v1176, 16
    %v1512 = vrot.slane %v1510, 1
    %v1513 = vsel %vm1181, %v1508, %v1512
    %v1515 = vshrl.u32 %v1145, 16
    %v1517 = vshll.u32 %v1145, 16
    %v1519 = vrot.slane %v1517, 1
    %v1520 = vor.u32 %v1515, %v1519
    %v1522 = vshll.u32 %v1177, 16
    %v1524 = vrot.slane %v1522, 1
    %v1525 = vsel %vm1181, %v1520, %v1524
    %v1527 = vshrl.u32 %v1146, 16
    %v1529 = vshll.u32 %v1146, 16
    %v1531 = vrot.slane %v1529, 1
    %v1532 = vor.u32 %v1527, %v1531
    %v1534 = vshll.u32 %v1178, 16
    %v1536 = vrot.slane %v1534, 1
    %v1537 = vsel %vm1181, %v1532, %v1536
    %v1539 = vshrl.u32 %v1147, 16
    %v1541 = vshll.u32 %v1147, 16
    %v1543 = vrot.slane %v1541, 1
    %v1544 = vor.u32 %v1539, %v1543
    %v1546 = vshll.u32 %v1179, 16
    %v1548 = vrot.slane %v1546, 1
    %v1549 = vsel %vm1181, %v1544, %v1548
    %1550 = vrot.lane.b32.xlu0 %v1189, 32
    %v1551 = vpop.permute.xlu0 %1550
    %1552 = vrot.lane.b32.xlu0 %v1201, 32
    %v1553 = vpop.permute.xlu0 %1552
    %1554 = vrot.lane.b32.xlu0 %v1213, 32
    %v1555 = vpop.permute.xlu0 %1554
    %1556 = vrot.lane.b32.xlu0 %v1225, 32
    %v1557 = vpop.permute.xlu0 %1556
    %1558 = vrot.lane.b32.xlu0 %v1237, 32
    %v1559 = vpop.permute.xlu0 %1558
    %1560 = vrot.lane.b32.xlu0 %v1249, 32
    %v1561 = vpop.permute.xlu0 %1560
    %1562 = vrot.lane.b32.xlu0 %v1261, 32
    %v1563 = vpop.permute.xlu0 %1562
    %1564 = vrot.lane.b32.xlu0 %v1273, 32
    %v1565 = vpop.permute.xlu0 %1564
    %1566 = vrot.lane.b32.xlu0 %v1285, 32
    %v1567 = vpop.permute.xlu0 %1566
    %1568 = vrot.lane.b32.xlu0 %v1297, 32
    %v1569 = vpop.permute.xlu0 %1568
    %1570 = vrot.lane.b32.xlu0 %v1309, 32
    %v1571 = vpop.permute.xlu0 %1570
    %1572 = vrot.lane.b32.xlu0 %v1321, 32
    %v1573 = vpop.permute.xlu0 %1572
    %1574 = vrot.lane.b32.xlu0 %v1333, 32
    %v1575 = vpop.permute.xlu0 %1574
    %1576 = vrot.lane.b32.xlu0 %v1345, 32
    %v1577 = vpop.permute.xlu0 %1576
    %1578 = vrot.lane.b32.xlu0 %v1357, 32
    %v1579 = vpop.permute.xlu0 %1578
    %1580 = vrot.lane.b32.xlu0 %v1369, 32
    %v1581 = vpop.permute.xlu0 %1580
    %1582 = vrot.lane.b32.xlu0 %v1381, 32
    %v1583 = vpop.permute.xlu0 %1582
    %1584 = vrot.lane.b32.xlu0 %v1393, 32
    %v1585 = vpop.permute.xlu0 %1584
    %1586 = vrot.lane.b32.xlu0 %v1405, 32
    %v1587 = vpop.permute.xlu0 %1586
    %1588 = vrot.lane.b32.xlu0 %v1417, 32
    %v1589 = vpop.permute.xlu0 %1588
    %1590 = vrot.lane.b32.xlu0 %v1429, 32
    %v1591 = vpop.permute.xlu0 %1590
    %1592 = vrot.lane.b32.xlu0 %v1441, 32
    %v1593 = vpop.permute.xlu0 %1592
    %1594 = vrot.lane.b32.xlu0 %v1453, 32
    %v1595 = vpop.permute.xlu0 %1594
    %1596 = vrot.lane.b32.xlu0 %v1465, 32
    %v1597 = vpop.permute.xlu0 %1596
    %1598 = vrot.lane.b32.xlu0 %v1477, 32
    %v1599 = vpop.permute.xlu0 %1598
    %1600 = vrot.lane.b32.xlu0 %v1489, 32
    %v1601 = vpop.permute.xlu0 %1600
    %1602 = vrot.lane.b32.xlu0 %v1501, 32
    %v1603 = vpop.permute.xlu0 %1602
    %1604 = vrot.lane.b32.xlu0 %v1513, 32
    %v1605 = vpop.permute.xlu0 %1604
    %1606 = vrot.lane.b32.xlu0 %v1525, 32
    %v1607 = vpop.permute.xlu0 %1606
    %1608 = vrot.lane.b32.xlu0 %v1537, 32
    %v1609 = vpop.permute.xlu0 %1608
    %1610 = vrot.lane.b32.xlu0 %v1549, 32
    %v1611 = vpop.permute.xlu0 %1610
    %vm1673 = vcmask 1046528
    %v1674 = vrot.slane 0, 1
    %v1675 = vsel %vm1673, %v1674, %v1674
    %v1676 = vrot.slane %v1117, 1
    %v1677 = vrot.slane %v1149, 1
    %v1678 = vsel %vm1673, %v1676, %v1677
    %v1679 = vrot.slane %v1118, 1
    %v1680 = vrot.slane %v1150, 1
    %v1681 = vsel %vm1673, %v1679, %v1680
    %v1682 = vrot.slane %v1119, 1
    %v1683 = vrot.slane %v1151, 1
    %v1684 = vsel %vm1673, %v1682, %v1683
    %v1685 = vrot.slane %v1120, 1
    %v1686 = vrot.slane %v1152, 1
    %v1687 = vsel %vm1673, %v1685, %v1686
    %v1688 = vrot.slane %v1121, 1
    %v1689 = vrot.slane %v1153, 1
    %v1690 = vsel %vm1673, %v1688, %v1689
    %v1691 = vrot.slane %v1122, 1
    %v1692 = vrot.slane %v1154, 1
    %v1693 = vsel %vm1673, %v1691, %v1692
    %v1694 = vrot.slane %v1123, 1
    %v1695 = vrot.slane %v1155, 1
    %v1696 = vsel %vm1673, %v1694, %v1695
    %v1697 = vrot.slane %v1124, 1
    %v1698 = vrot.slane %v1156, 1
    %v1699 = vsel %vm1673, %v1697, %v1698
    %v1700 = vrot.slane %v1125, 1
    %v1701 = vrot.slane %v1157, 1
    %v1702 = vsel %vm1673, %v1700, %v1701
    %v1703 = vrot.slane %v1126, 1
    %v1704 = vrot.slane %v1158, 1
    %v1705 = vsel %vm1673, %v1703, %v1704
    %v1706 = vrot.slane %v1127, 1
    %v1707 = vrot.slane %v1159, 1
    %v1708 = vsel %vm1673, %v1706, %v1707
    %v1709 = vrot.slane %v1128, 1
    %v1710 = vrot.slane %v1160, 1
    %v1711 = vsel %vm1673, %v1709, %v1710
    %v1712 = vrot.slane %v1129, 1
    %v1713 = vrot.slane %v1161, 1
    %v1714 = vsel %vm1673, %v1712, %v1713
    %v1715 = vrot.slane %v1130, 1
    %v1716 = vrot.slane %v1162, 1
    %v1717 = vsel %vm1673, %v1715, %v1716
    %v1718 = vrot.slane %v1131, 1
    %v1719 = vrot.slane %v1163, 1
    %v1720 = vsel %vm1673, %v1718, %v1719
    %v1721 = vrot.slane %v1133, 1
    %v1722 = vrot.slane %v1165, 1
    %v1723 = vsel %vm1673, %v1721, %v1722
    %v1724 = vrot.slane %v1134, 1
    %v1725 = vrot.slane %v1166, 1
    %v1726 = vsel %vm1673, %v1724, %v1725
    %v1727 = vrot.slane %v1135, 1
    %v1728 = vrot.slane %v1167, 1
    %v1729 = vsel %vm1673, %v1727, %v1728
    %v1730 = vrot.slane %v1136, 1
    %v1731 = vrot.slane %v1168, 1
    %v1732 = vsel %vm1673, %v1730, %v1731
    %v1733 = vrot.slane %v1137, 1
    %v1734 = vrot.slane %v1169, 1
    %v1735 = vsel %vm1673, %v1733, %v1734
    %v1736 = vrot.slane %v1138, 1
    %v1737 = vrot.slane %v1170, 1
    %v1738 = vsel %vm1673, %v1736, %v1737
    %v1739 = vrot.slane %v1139, 1
    %v1740 = vrot.slane %v1171, 1
    %v1741 = vsel %vm1673, %v1739, %v1740
    %v1742 = vrot.slane %v1140, 1
    %v1743 = vrot.slane %v1172, 1
    %v1744 = vsel %vm1673, %v1742, %v1743
    %v1745 = vrot.slane %v1141, 1
    %v1746 = vrot.slane %v1173, 1
    %v1747 = vsel %vm1673, %v1745, %v1746
    %v1748 = vrot.slane %v1142, 1
    %v1749 = vrot.slane %v1174, 1
    %v1750 = vsel %vm1673, %v1748, %v1749
    %v1751 = vrot.slane %v1143, 1
    %v1752 = vrot.slane %v1175, 1
    %v1753 = vsel %vm1673, %v1751, %v1752
    %v1754 = vrot.slane %v1144, 1
    %v1755 = vrot.slane %v1176, 1
    %v1756 = vsel %vm1673, %v1754, %v1755
    %v1757 = vrot.slane %v1145, 1
    %v1758 = vrot.slane %v1177, 1
    %v1759 = vsel %vm1673, %v1757, %v1758
    %v1760 = vrot.slane %v1146, 1
    %v1761 = vrot.slane %v1178, 1
    %v1762 = vsel %vm1673, %v1760, %v1761
    %v1763 = vrot.slane %v1147, 1
    %v1764 = vrot.slane %v1179, 1
    %v1765 = vsel %vm1673, %v1763, %v1764
    %1766 = vrot.lane.b32.xlu0 %v1675, 64
    %v1767 = vpop.permute.xlu0 %1766
    %1768 = vrot.lane.b32.xlu0 %v1678, 64
    %v1769 = vpop.permute.xlu0 %1768
    %1770 = vrot.lane.b32.xlu0 %v1681, 64
    %v1771 = vpop.permute.xlu0 %1770
    %1772 = vrot.lane.b32.xlu0 %v1684, 64
    %v1773 = vpop.permute.xlu0 %1772
    %1774 = vrot.lane.b32.xlu0 %v1687, 64
    %v1775 = vpop.permute.xlu0 %1774
    %1776 = vrot.lane.b32.xlu0 %v1690, 64
    %v1777 = vpop.permute.xlu0 %1776
    %1778 = vrot.lane.b32.xlu0 %v1693, 64
    %v1779 = vpop.permute.xlu0 %1778
    %1780 = vrot.lane.b32.xlu0 %v1696, 64
    %v1781 = vpop.permute.xlu0 %1780
    %1782 = vrot.lane.b32.xlu0 %v1699, 64
    %v1783 = vpop.permute.xlu0 %1782
    %1784 = vrot.lane.b32.xlu0 %v1702, 64
    %v1785 = vpop.permute.xlu0 %1784
    %1786 = vrot.lane.b32.xlu0 %v1705, 64
    %v1787 = vpop.permute.xlu0 %1786
    %1788 = vrot.lane.b32.xlu0 %v1708, 64
    %v1789 = vpop.permute.xlu0 %1788
    %1790 = vrot.lane.b32.xlu0 %v1711, 64
    %v1791 = vpop.permute.xlu0 %1790
    %1792 = vrot.lane.b32.xlu0 %v1714, 64
    %v1793 = vpop.permute.xlu0 %1792
    %1794 = vrot.lane.b32.xlu0 %v1717, 64
    %v1795 = vpop.permute.xlu0 %1794
    %1796 = vrot.lane.b32.xlu0 %v1720, 64
    %v1797 = vpop.permute.xlu0 %1796
    %1798 = vrot.lane.b32.xlu0 %v1723, 64
    %v1799 = vpop.permute.xlu0 %1798
    %1800 = vrot.lane.b32.xlu0 %v1726, 64
    %v1801 = vpop.permute.xlu0 %1800
    %1802 = vrot.lane.b32.xlu0 %v1729, 64
    %v1803 = vpop.permute.xlu0 %1802
    %1804 = vrot.lane.b32.xlu0 %v1732, 64
    %v1805 = vpop.permute.xlu0 %1804
    %1806 = vrot.lane.b32.xlu0 %v1735, 64
    %v1807 = vpop.permute.xlu0 %1806
    %1808 = vrot.lane.b32.xlu0 %v1738, 64
    %v1809 = vpop.permute.xlu0 %1808
    %1810 = vrot.lane.b32.xlu0 %v1741, 64
    %v1811 = vpop.permute.xlu0 %1810
    %1812 = vrot.lane.b32.xlu0 %v1744, 64
    %v1813 = vpop.permute.xlu0 %1812
    %1814 = vrot.lane.b32.xlu0 %v1747, 64
    %v1815 = vpop.permute.xlu0 %1814
    %1816 = vrot.lane.b32.xlu0 %v1750, 64
    %v1817 = vpop.permute.xlu0 %1816
    %1818 = vrot.lane.b32.xlu0 %v1753, 64
    %v1819 = vpop.permute.xlu0 %1818
    %1820 = vrot.lane.b32.xlu0 %v1756, 64
    %v1821 = vpop.permute.xlu0 %1820
    %1822 = vrot.lane.b32.xlu0 %v1759, 64
    %v1823 = vpop.permute.xlu0 %1822
    %1824 = vrot.lane.b32.xlu0 %v1762, 64
    %v1825 = vpop.permute.xlu0 %1824
    %1826 = vrot.lane.b32.xlu0 %v1765, 64
    %v1827 = vpop.permute.xlu0 %1826
    %1830 = vrot.lane.b32.xlu0 %v1117, 96
    %v1831 = vpop.permute.xlu0 %1830
    %1832 = vrot.lane.b32.xlu0 %v1118, 96
    %v1833 = vpop.permute.xlu0 %1832
    %1834 = vrot.lane.b32.xlu0 %v1119, 96
    %v1835 = vpop.permute.xlu0 %1834
    %1836 = vrot.lane.b32.xlu0 %v1120, 96
    %v1837 = vpop.permute.xlu0 %1836
    %1838 = vrot.lane.b32.xlu0 %v1121, 96
    %v1839 = vpop.permute.xlu0 %1838
    %1840 = vrot.lane.b32.xlu0 %v1122, 96
    %v1841 = vpop.permute.xlu0 %1840
    %1842 = vrot.lane.b32.xlu0 %v1123, 96
    %v1843 = vpop.permute.xlu0 %1842
    %1844 = vrot.lane.b32.xlu0 %v1124, 96
    %v1845 = vpop.permute.xlu0 %1844
    %1846 = vrot.lane.b32.xlu0 %v1125, 96
    %v1847 = vpop.permute.xlu0 %1846
    %1848 = vrot.lane.b32.xlu0 %v1126, 96
    %v1849 = vpop.permute.xlu0 %1848
    %1850 = vrot.lane.b32.xlu0 %v1127, 96
    %v1851 = vpop.permute.xlu0 %1850
    %1852 = vrot.lane.b32.xlu0 %v1128, 96
    %v1853 = vpop.permute.xlu0 %1852
    %1854 = vrot.lane.b32.xlu0 %v1129, 96
    %v1855 = vpop.permute.xlu0 %1854
    %1856 = vrot.lane.b32.xlu0 %v1130, 96
    %v1857 = vpop.permute.xlu0 %1856
    %1858 = vrot.lane.b32.xlu0 %v1131, 96
    %v1859 = vpop.permute.xlu0 %1858
    %1860 = vrot.lane.b32.xlu0 %v1132, 96
    %v1861 = vpop.permute.xlu0 %1860
    %1862 = vrot.lane.b32.xlu0 %v1133, 96
    %v1863 = vpop.permute.xlu0 %1862
    %1864 = vrot.lane.b32.xlu0 %v1134, 96
    %v1865 = vpop.permute.xlu0 %1864
    %1866 = vrot.lane.b32.xlu0 %v1135, 96
    %v1867 = vpop.permute.xlu0 %1866
    %1868 = vrot.lane.b32.xlu0 %v1136, 96
    %v1869 = vpop.permute.xlu0 %1868
    %1870 = vrot.lane.b32.xlu0 %v1137, 96
    %v1871 = vpop.permute.xlu0 %1870
    %1872 = vrot.lane.b32.xlu0 %v1138, 96
    %v1873 = vpop.permute.xlu0 %1872
    %1874 = vrot.lane.b32.xlu0 %v1139, 96
    %v1875 = vpop.permute.xlu0 %1874
    %1876 = vrot.lane.b32.xlu0 %v1140, 96
    %v1877 = vpop.permute.xlu0 %1876
    %1878 = vrot.lane.b32.xlu0 %v1141, 96
    %v1879 = vpop.permute.xlu0 %1878
    %1880 = vrot.lane.b32.xlu0 %v1142, 96
    %v1881 = vpop.permute.xlu0 %1880
    %1882 = vrot.lane.b32.xlu0 %v1143, 96
    %v1883 = vpop.permute.xlu0 %1882
    %1884 = vrot.lane.b32.xlu0 %v1144, 96
    %v1885 = vpop.permute.xlu0 %1884
    %1886 = vrot.lane.b32.xlu0 %v1145, 96
    %v1887 = vpop.permute.xlu0 %1886
    %1888 = vrot.lane.b32.xlu0 %v1146, 96
    %v1889 = vpop.permute.xlu0 %1888
    %1890 = vrot.lane.b32.xlu0 %v1147, 96
    %v1891 = vpop.permute.xlu0 %1890
    %1892 = vrot.lane.b32.xlu0 %v1148, 96
    %v1893 = vpop.permute.xlu0 %1892
    %v1895 = vshrl.u32 %v1132, 16
    %v1897 = vshll.u32 %v1132, 16
    %v1899 = vrot.slane %v1897, 1
    %v1900 = vor.u32 %v1895, %v1899
    %v1902 = vshll.u32 %v1164, 16
    %v1904 = vrot.slane %v1902, 1
    %v1905 = vsel %vm1181, %v1900, %v1904
    %v1907 = vshrl.u32 %v1148, 16
    %v1909 = vshll.u32 %v1148, 16
    %v1911 = vrot.slane %v1909, 1
    %v1912 = vor.u32 %v1907, %v1911
    %v1914 = vshll.u32 %v1180, 16
    %v1916 = vrot.slane %v1914, 1
    %v1917 = vsel %vm1181, %v1912, %v1916
    %v1920 = vrot.slane %v1132, 1
    %v1921 = vrot.slane %v1164, 1
    %v1922 = vsel %vm1673, %v1920, %v1921
    %v1923 = vrot.slane %v1148, 1
    %v1924 = vrot.slane %v1180, 1
    %v1925 = vsel %vm1673, %v1923, %v1924
    %1926 = vrot.lane.b32.xlu0 %v1678, 32
    %v1927 = vpop.permute.xlu0 %1926
    %1928 = vrot.lane.b32.xlu0 %v1681, 32
    %v1929 = vpop.permute.xlu0 %1928
    %1930 = vrot.lane.b32.xlu0 %v1684, 32
    %v1931 = vpop.permute.xlu0 %1930
    %1932 = vrot.lane.b32.xlu0 %v1687, 32
    %v1933 = vpop.permute.xlu0 %1932
    %1934 = vrot.lane.b32.xlu0 %v1690, 32
    %v1935 = vpop.permute.xlu0 %1934
    %1936 = vrot.lane.b32.xlu0 %v1693, 32
    %v1937 = vpop.permute.xlu0 %1936
    %1938 = vrot.lane.b32.xlu0 %v1696, 32
    %v1939 = vpop.permute.xlu0 %1938
    %1940 = vrot.lane.b32.xlu0 %v1699, 32
    %v1941 = vpop.permute.xlu0 %1940
    %1942 = vrot.lane.b32.xlu0 %v1702, 32
    %v1943 = vpop.permute.xlu0 %1942
    %1944 = vrot.lane.b32.xlu0 %v1705, 32
    %v1945 = vpop.permute.xlu0 %1944
    %1946 = vrot.lane.b32.xlu0 %v1708, 32
    %v1947 = vpop.permute.xlu0 %1946
    %1948 = vrot.lane.b32.xlu0 %v1711, 32
    %v1949 = vpop.permute.xlu0 %1948
    %1950 = vrot.lane.b32.xlu0 %v1714, 32
    %v1951 = vpop.permute.xlu0 %1950
    %1952 = vrot.lane.b32.xlu0 %v1717, 32
    %v1953 = vpop.permute.xlu0 %1952
    %1954 = vrot.lane.b32.xlu0 %v1720, 32
    %v1955 = vpop.permute.xlu0 %1954
    %1956 = vrot.lane.b32.xlu0 %v1922, 32
    %v1957 = vpop.permute.xlu0 %1956
    %1958 = vrot.lane.b32.xlu0 %v1723, 32
    %v1959 = vpop.permute.xlu0 %1958
    %1960 = vrot.lane.b32.xlu0 %v1726, 32
    %v1961 = vpop.permute.xlu0 %1960
    %1962 = vrot.lane.b32.xlu0 %v1729, 32
    %v1963 = vpop.permute.xlu0 %1962
    %1964 = vrot.lane.b32.xlu0 %v1732, 32
    %v1965 = vpop.permute.xlu0 %1964
    %1966 = vrot.lane.b32.xlu0 %v1735, 32
    %v1967 = vpop.permute.xlu0 %1966
    %1968 = vrot.lane.b32.xlu0 %v1738, 32
    %v1969 = vpop.permute.xlu0 %1968
    %1970 = vrot.lane.b32.xlu0 %v1741, 32
    %v1971 = vpop.permute.xlu0 %1970
    %1972 = vrot.lane.b32.xlu0 %v1744, 32
    %v1973 = vpop.permute.xlu0 %1972
    %1974 = vrot.lane.b32.xlu0 %v1747, 32
    %v1975 = vpop.permute.xlu0 %1974
    %1976 = vrot.lane.b32.xlu0 %v1750, 32
    %v1977 = vpop.permute.xlu0 %1976
    %1978 = vrot.lane.b32.xlu0 %v1753, 32
    %v1979 = vpop.permute.xlu0 %1978
    %1980 = vrot.lane.b32.xlu0 %v1756, 32
    %v1981 = vpop.permute.xlu0 %1980
    %1982 = vrot.lane.b32.xlu0 %v1759, 32
    %v1983 = vpop.permute.xlu0 %1982
    %1984 = vrot.lane.b32.xlu0 %v1762, 32
    %v1985 = vpop.permute.xlu0 %1984
    %1986 = vrot.lane.b32.xlu0 %v1765, 32
    %v1987 = vpop.permute.xlu0 %1986
    %1988 = vrot.lane.b32.xlu0 %v1925, 32
    %v1989 = vpop.permute.xlu0 %1988
    %1990 = vrot.lane.b32.xlu0 %v1118, 64
    %v1991 = vpop.permute.xlu0 %1990
    %1992 = vrot.lane.b32.xlu0 %v1119, 64
    %v1993 = vpop.permute.xlu0 %1992
    %1994 = vrot.lane.b32.xlu0 %v1120, 64
    %v1995 = vpop.permute.xlu0 %1994
    %1996 = vrot.lane.b32.xlu0 %v1121, 64
    %v1997 = vpop.permute.xlu0 %1996
    %1998 = vrot.lane.b32.xlu0 %v1122, 64
    %v1999 = vpop.permute.xlu0 %1998
    %2000 = vrot.lane.b32.xlu0 %v1123, 64
    %v2001 = vpop.permute.xlu0 %2000
    %2002 = vrot.lane.b32.xlu0 %v1124, 64
    %v2003 = vpop.permute.xlu0 %2002
    %2004 = vrot.lane.b32.xlu0 %v1125, 64
    %v2005 = vpop.permute.xlu0 %2004
    %2006 = vrot.lane.b32.xlu0 %v1126, 64
    %v2007 = vpop.permute.xlu0 %2006
    %2008 = vrot.lane.b32.xlu0 %v1127, 64
    %v2009 = vpop.permute.xlu0 %2008
    %2010 = vrot.lane.b32.xlu0 %v1128, 64
    %v2011 = vpop.permute.xlu0 %2010
    %2012 = vrot.lane.b32.xlu0 %v1129, 64
    %v2013 = vpop.permute.xlu0 %2012
    %2014 = vrot.lane.b32.xlu0 %v1130, 64
    %v2015 = vpop.permute.xlu0 %2014
    %2016 = vrot.lane.b32.xlu0 %v1131, 64
    %v2017 = vpop.permute.xlu0 %2016
    %2018 = vrot.lane.b32.xlu0 %v1132, 64
    %v2019 = vpop.permute.xlu0 %2018
    %2020 = vrot.lane.b32.xlu0 0, 64
    %v2021 = vpop.permute.xlu0 %2020
    %2022 = vrot.lane.b32.xlu0 %v1134, 64
    %v2023 = vpop.permute.xlu0 %2022
    %2024 = vrot.lane.b32.xlu0 %v1135, 64
    %v2025 = vpop.permute.xlu0 %2024
    %2026 = vrot.lane.b32.xlu0 %v1136, 64
    %v2027 = vpop.permute.xlu0 %2026
    %2028 = vrot.lane.b32.xlu0 %v1137, 64
    %v2029 = vpop.permute.xlu0 %2028
    %2030 = vrot.lane.b32.xlu0 %v1138, 64
    %v2031 = vpop.permute.xlu0 %2030
    %2032 = vrot.lane.b32.xlu0 %v1139, 64
    %v2033 = vpop.permute.xlu0 %2032
    %2034 = vrot.lane.b32.xlu0 %v1140, 64
    %v2035 = vpop.permute.xlu0 %2034
    %2036 = vrot.lane.b32.xlu0 %v1141, 64
    %v2037 = vpop.permute.xlu0 %2036
    %2038 = vrot.lane.b32.xlu0 %v1142, 64
    %v2039 = vpop.permute.xlu0 %2038
    %2040 = vrot.lane.b32.xlu0 %v1143, 64
    %v2041 = vpop.permute.xlu0 %2040
    %2042 = vrot.lane.b32.xlu0 %v1144, 64
    %v2043 = vpop.permute.xlu0 %2042
    %2044 = vrot.lane.b32.xlu0 %v1145, 64
    %v2045 = vpop.permute.xlu0 %2044
    %2046 = vrot.lane.b32.xlu0 %v1146, 64
    %v2047 = vpop.permute.xlu0 %2046
    %2048 = vrot.lane.b32.xlu0 %v1147, 64
    %v2049 = vpop.permute.xlu0 %2048
    %2050 = vrot.lane.b32.xlu0 %v1148, 64
    %v2051 = vpop.permute.xlu0 %2050
    %2052 = vrot.lane.b32.xlu0 %v1213, 96
    %v2053 = vpop.permute.xlu0 %2052
    %2054 = vrot.lane.b32.xlu0 %v1225, 96
    %v2055 = vpop.permute.xlu0 %2054
    %2056 = vrot.lane.b32.xlu0 %v1237, 96
    %v2057 = vpop.permute.xlu0 %2056
    %2058 = vrot.lane.b32.xlu0 %v1249, 96
    %v2059 = vpop.permute.xlu0 %2058
    %2060 = vrot.lane.b32.xlu0 %v1261, 96
    %v2061 = vpop.permute.xlu0 %2060
    %2062 = vrot.lane.b32.xlu0 %v1273, 96
    %v2063 = vpop.permute.xlu0 %2062
    %2064 = vrot.lane.b32.xlu0 %v1285, 96
    %v2065 = vpop.permute.xlu0 %2064
    %2066 = vrot.lane.b32.xlu0 %v1297, 96
    %v2067 = vpop.permute.xlu0 %2066
    %2068 = vrot.lane.b32.xlu0 %v1309, 96
    %v2069 = vpop.permute.xlu0 %2068
    %2070 = vrot.lane.b32.xlu0 %v1321, 96
    %v2071 = vpop.permute.xlu0 %2070
    %2072 = vrot.lane.b32.xlu0 %v1333, 96
    %v2073 = vpop.permute.xlu0 %2072
    %2074 = vrot.lane.b32.xlu0 %v1345, 96
    %v2075 = vpop.permute.xlu0 %2074
    %2076 = vrot.lane.b32.xlu0 %v1357, 96
    %v2077 = vpop.permute.xlu0 %2076
    %2078 = vrot.lane.b32.xlu0 %v1369, 96
    %v2079 = vpop.permute.xlu0 %2078
    %2080 = vrot.lane.b32.xlu0 %v1905, 96
    %v2081 = vpop.permute.xlu0 %2080
    %2082 = vrot.lane.b32.xlu0 %v1189, 96
    %v2083 = vpop.permute.xlu0 %2082
    %2084 = vrot.lane.b32.xlu0 %v1393, 96
    %v2085 = vpop.permute.xlu0 %2084
    %2086 = vrot.lane.b32.xlu0 %v1405, 96
    %v2087 = vpop.permute.xlu0 %2086
    %2088 = vrot.lane.b32.xlu0 %v1417, 96
    %v2089 = vpop.permute.xlu0 %2088
    %2090 = vrot.lane.b32.xlu0 %v1429, 96
    %v2091 = vpop.permute.xlu0 %2090
    %2092 = vrot.lane.b32.xlu0 %v1441, 96
    %v2093 = vpop.permute.xlu0 %2092
    %2094 = vrot.lane.b32.xlu0 %v1453, 96
    %v2095 = vpop.permute.xlu0 %2094
    %2096 = vrot.lane.b32.xlu0 %v1465, 96
    %v2097 = vpop.permute.xlu0 %2096
    %2098 = vrot.lane.b32.xlu0 %v1477, 96
    %v2099 = vpop.permute.xlu0 %2098
    %2100 = vrot.lane.b32.xlu0 %v1489, 96
    %v2101 = vpop.permute.xlu0 %2100
    %2102 = vrot.lane.b32.xlu0 %v1501, 96
    %v2103 = vpop.permute.xlu0 %2102
    %2104 = vrot.lane.b32.xlu0 %v1513, 96
    %v2105 = vpop.permute.xlu0 %2104
    %2106 = vrot.lane.b32.xlu0 %v1525, 96
    %v2107 = vpop.permute.xlu0 %2106
    %2108 = vrot.lane.b32.xlu0 %v1537, 96
    %v2109 = vpop.permute.xlu0 %2108
    %2110 = vrot.lane.b32.xlu0 %v1549, 96
    %v2111 = vpop.permute.xlu0 %2110
    %2112 = vrot.lane.b32.xlu0 %v1917, 96
    %v2113 = vpop.permute.xlu0 %2112
    %v2115 = vsel %vm272, 0, %v1551
    %v2117 = vsel %vm272, %v1117, %v1553
    %v2119 = vsel %vm272, %v1118, %v1555
    %v2121 = vsel %vm272, %v1119, %v1557
    %v2123 = vsel %vm272, %v1120, %v1559
    %v2125 = vsel %vm272, %v1121, %v1561
    %v2127 = vsel %vm272, %v1122, %v1563
    %v2129 = vsel %vm272, %v1123, %v1565
    %v2131 = vsel %vm272, %v1124, %v1567
    %v2133 = vsel %vm272, %v1125, %v1569
    %v2135 = vsel %vm272, %v1126, %v1571
    %v2137 = vsel %vm272, %v1127, %v1573
    %v2139 = vsel %vm272, %v1128, %v1575
    %v2141 = vsel %vm272, %v1129, %v1577
    %v2143 = vsel %vm272, %v1130, %v1579
    %v2145 = vsel %vm272, %v1131, %v1581
    %v2147 = vsel %vm272, %v1133, %v1583
    %v2149 = vsel %vm272, %v1134, %v1585
    %v2151 = vsel %vm272, %v1135, %v1587
    %v2153 = vsel %vm272, %v1136, %v1589
    %v2155 = vsel %vm272, %v1137, %v1591
    %v2157 = vsel %vm272, %v1138, %v1593
    %v2159 = vsel %vm272, %v1139, %v1595
    %v2161 = vsel %vm272, %v1140, %v1597
    %v2163 = vsel %vm272, %v1141, %v1599
    %v2165 = vsel %vm272, %v1142, %v1601
    %v2167 = vsel %vm272, %v1143, %v1603
    %v2169 = vsel %vm272, %v1144, %v1605
    %v2171 = vsel %vm272, %v1145, %v1607
    %v2173 = vsel %vm272, %v1146, %v1609
    %v2175 = vsel %vm272, %v1147, %v1611
    %vm2176 = vcmask 523264
    %v2178 = vsel %vm2176, %v2115, %v1767
    %v2180 = vsel %vm2176, %v2117, %v1769
    %v2182 = vsel %vm2176, %v2119, %v1771
    %v2184 = vsel %vm2176, %v2121, %v1773
    %v2186 = vsel %vm2176, %v2123, %v1775
    %v2188 = vsel %vm2176, %v2125, %v1777
    %v2190 = vsel %vm2176, %v2127, %v1779
    %v2192 = vsel %vm2176, %v2129, %v1781
    %v2194 = vsel %vm2176, %v2131, %v1783
    %v2196 = vsel %vm2176, %v2133, %v1785
    %v2198 = vsel %vm2176, %v2135, %v1787
    %v2200 = vsel %vm2176, %v2137, %v1789
    %v2202 = vsel %vm2176, %v2139, %v1791
    %v2204 = vsel %vm2176, %v2141, %v1793
    %v2206 = vsel %vm2176, %v2143, %v1795
    %v2208 = vsel %vm2176, %v2145, %v1797
    %v2210 = vsel %vm2176, %v2147, %v1799
    %v2212 = vsel %vm2176, %v2149, %v1801
    %v2214 = vsel %vm2176, %v2151, %v1803
    %v2216 = vsel %vm2176, %v2153, %v1805
    %v2218 = vsel %vm2176, %v2155, %v1807
    %v2220 = vsel %vm2176, %v2157, %v1809
    %v2222 = vsel %vm2176, %v2159, %v1811
    %v2224 = vsel %vm2176, %v2161, %v1813
    %v2226 = vsel %vm2176, %v2163, %v1815
    %v2228 = vsel %vm2176, %v2165, %v1817
    %v2230 = vsel %vm2176, %v2167, %v1819
    %v2232 = vsel %vm2176, %v2169, %v1821
    %v2234 = vsel %vm2176, %v2171, %v1823
    %v2236 = vsel %vm2176, %v2173, %v1825
    %v2238 = vsel %vm2176, %v2175, %v1827
    %vm2239 = vcmask 785408
    %v2241 = vsel %vm2239, %v2178, %v1831
    %v2244 = vsel %vm2239, %v2180, %v1833
    %v2247 = vsel %vm2239, %v2182, %v1835
    %v2250 = vsel %vm2239, %v2184, %v1837
    %v2253 = vsel %vm2239, %v2186, %v1839
    %v2256 = vsel %vm2239, %v2188, %v1841
    %v2259 = vsel %vm2239, %v2190, %v1843
    %v2262 = vsel %vm2239, %v2192, %v1845
    %v2265 = vsel %vm2239, %v2194, %v1847
    %v2268 = vsel %vm2239, %v2196, %v1849
    %v2271 = vsel %vm2239, %v2198, %v1851
    %v2274 = vsel %vm2239, %v2200, %v1853
    %v2277 = vsel %vm2239, %v2202, %v1855
    %v2280 = vsel %vm2239, %v2204, %v1857
    %v2283 = vsel %vm2239, %v2206, %v1859
    %v2286 = vsel %vm2239, %v2208, %v1861
    %v2289 = vsel %vm2239, %v2178, %v1863
    %v2292 = vsel %vm2239, %v2210, %v1865
    %v2295 = vsel %vm2239, %v2212, %v1867
    %v2298 = vsel %vm2239, %v2214, %v1869
    %v2301 = vsel %vm2239, %v2216, %v1871
    %v2304 = vsel %vm2239, %v2218, %v1873
    %v2307 = vsel %vm2239, %v2220, %v1875
    %v2310 = vsel %vm2239, %v2222, %v1877
    %v2313 = vsel %vm2239, %v2224, %v1879
    %v2316 = vsel %vm2239, %v2226, %v1881
    %v2319 = vsel %vm2239, %v2228, %v1883
    %v2322 = vsel %vm2239, %v2230, %v1885
    %v2325 = vsel %vm2239, %v2232, %v1887
    %v2328 = vsel %vm2239, %v2234, %v1889
    %v2331 = vsel %vm2239, %v2236, %v1891
    %v2334 = vsel %vm2239, %v2238, %v1893
    %v2338 = vsel %vm272, %v1201, %v1927
    %v2341 = vsel %vm272, %v1213, %v1929
    %v2344 = vsel %vm272, %v1225, %v1931
    %v2347 = vsel %vm272, %v1237, %v1933
    %v2350 = vsel %vm272, %v1249, %v1935
    %v2353 = vsel %vm272, %v1261, %v1937
    %v2356 = vsel %vm272, %v1273, %v1939
    %v2359 = vsel %vm272, %v1285, %v1941
    %v2362 = vsel %vm272, %v1297, %v1943
    %v2365 = vsel %vm272, %v1309, %v1945
    %v2368 = vsel %vm272, %v1321, %v1947
    %v2371 = vsel %vm272, %v1333, %v1949
    %v2374 = vsel %vm272, %v1345, %v1951
    %v2377 = vsel %vm272, %v1357, %v1953
    %v2380 = vsel %vm272, %v1369, %v1955
    %v2383 = vsel %vm272, %v1905, %v1957
    %v2386 = vsel %vm272, %v1381, %v1959
    %v2389 = vsel %vm272, %v1393, %v1961
    %v2392 = vsel %vm272, %v1405, %v1963
    %v2395 = vsel %vm272, %v1417, %v1965
    %v2398 = vsel %vm272, %v1429, %v1967
    %v2401 = vsel %vm272, %v1441, %v1969
    %v2404 = vsel %vm272, %v1453, %v1971
    %v2407 = vsel %vm272, %v1465, %v1973
    %v2410 = vsel %vm272, %v1477, %v1975
    %v2413 = vsel %vm272, %v1489, %v1977
    %v2416 = vsel %vm272, %v1501, %v1979
    %v2419 = vsel %vm272, %v1513, %v1981
    %v2422 = vsel %vm272, %v1525, %v1983
    %v2425 = vsel %vm272, %v1537, %v1985
    %v2428 = vsel %vm272, %v1549, %v1987
    %v2431 = vsel %vm272, %v1917, %v1989
    %v2433 = vsel %vm2176, %v2338, %v1991
    %v2435 = vsel %vm2176, %v2341, %v1993
    %v2437 = vsel %vm2176, %v2344, %v1995
    %v2439 = vsel %vm2176, %v2347, %v1997
    %v2441 = vsel %vm2176, %v2350, %v1999
    %v2443 = vsel %vm2176, %v2353, %v2001
    %v2445 = vsel %vm2176, %v2356, %v2003
    %v2447 = vsel %vm2176, %v2359, %v2005
    %v2449 = vsel %vm2176, %v2362, %v2007
    %v2451 = vsel %vm2176, %v2365, %v2009
    %v2453 = vsel %vm2176, %v2368, %v2011
    %v2455 = vsel %vm2176, %v2371, %v2013
    %v2457 = vsel %vm2176, %v2374, %v2015
    %v2459 = vsel %vm2176, %v2377, %v2017
    %v2461 = vsel %vm2176, %v2380, %v2019
    %v2463 = vsel %vm2176, %v2383, %v2021
    %v2465 = vsel %vm2176, %v2386, %v2023
    %v2467 = vsel %vm2176, %v2389, %v2025
    %v2469 = vsel %vm2176, %v2392, %v2027
    %v2471 = vsel %vm2176, %v2395, %v2029
    %v2473 = vsel %vm2176, %v2398, %v2031
    %v2475 = vsel %vm2176, %v2401, %v2033
    %v2477 = vsel %vm2176, %v2404, %v2035
    %v2479 = vsel %vm2176, %v2407, %v2037
    %v2481 = vsel %vm2176, %v2410, %v2039
    %v2483 = vsel %vm2176, %v2413, %v2041
    %v2485 = vsel %vm2176, %v2416, %v2043
    %v2487 = vsel %vm2176, %v2419, %v2045
    %v2489 = vsel %vm2176, %v2422, %v2047
    %v2491 = vsel %vm2176, %v2425, %v2049
    %v2493 = vsel %vm2176, %v2428, %v2051
    %v2494 = vsel %vm2176, %v2431, %v2021
    %v2496 = vsel %vm2239, %v2433, %v2053
    %v2499 = vsel %vm2239, %v2435, %v2055
    %v2502 = vsel %vm2239, %v2437, %v2057
    %v2505 = vsel %vm2239, %v2439, %v2059
    %v2508 = vsel %vm2239, %v2441, %v2061
    %v2511 = vsel %vm2239, %v2443, %v2063
    %v2514 = vsel %vm2239, %v2445, %v2065
    %v2517 = vsel %vm2239, %v2447, %v2067
    %v2520 = vsel %vm2239, %v2449, %v2069
    %v2523 = vsel %vm2239, %v2451, %v2071
    %v2526 = vsel %vm2239, %v2453, %v2073
    %v2529 = vsel %vm2239, %v2455, %v2075
    %v2532 = vsel %vm2239, %v2457, %v2077
    %v2535 = vsel %vm2239, %v2459, %v2079
    %v2538 = vsel %vm2239, %v2461, %v2081
    %v2541 = vsel %vm2239, %v2463, %v2083
    %v2544 = vsel %vm2239, %v2465, %v2085
    %v2547 = vsel %vm2239, %v2467, %v2087
    %v2550 = vsel %vm2239, %v2469, %v2089
    %v2553 = vsel %vm2239, %v2471, %v2091
    %v2556 = vsel %vm2239, %v2473, %v2093
    %v2559 = vsel %vm2239, %v2475, %v2095
    %v2562 = vsel %vm2239, %v2477, %v2097
    %v2565 = vsel %vm2239, %v2479, %v2099
    %v2568 = vsel %vm2239, %v2481, %v2101
    %v2571 = vsel %vm2239, %v2483, %v2103
    %v2574 = vsel %vm2239, %v2485, %v2105
    %v2577 = vsel %vm2239, %v2487, %v2107
    %v2580 = vsel %vm2239, %v2489, %v2109
    %v2583 = vsel %vm2239, %v2491, %v2111
    %v2586 = vsel %vm2239, %v2493, %v2113
    %v2588 = vsel %vm2239, %v2494, %v2083
    %v2590 = vld [vmem:[%s3] sm:$0xf]
    %v2591 = vld [vmem:[%s3 + $0x4] sm:$0xf]
    %v2592 = vld [vmem:[%s3 + $0x8] sm:$0xf]
    %v2593 = vld [vmem:[%s3 + $0xc] sm:$0xf]
    %v2594 = vld [vmem:[%s3 + $0x10] sm:$0xf]
    %v2595 = vld [vmem:[%s3 + $0x14] sm:$0xf]
    %v2596 = vld [vmem:[%s3 + $0x18] sm:$0xf]
    %v2597 = vld [vmem:[%s3 + $0x1c] sm:$0xf]
    %v2598 = vld [vmem:[%s3 + $0x20] sm:$0xf]
    %v2599 = vld [vmem:[%s3 + $0x24] sm:$0xf]
    %v2600 = vld [vmem:[%s3 + $0x28] sm:$0xf]
    %v2601 = vld [vmem:[%s3 + $0x2c] sm:$0xf]
    %v2602 = vld [vmem:[%s3 + $0x30] sm:$0xf]
    %v2603 = vld [vmem:[%s3 + $0x34] sm:$0xf]
    %v2604 = vld [vmem:[%s3 + $0x38] sm:$0xf]
    %v2605 = vld [vmem:[%s3 + $0x3c] sm:$0xf]
    %v2606 = vld [vmem:[%s3 + $0x40] sm:$0xf]
    %v2607 = vld [vmem:[%s3 + $0x44] sm:$0xf]
    %v2608 = vld [vmem:[%s3 + $0x48] sm:$0xf]
    %v2609 = vld [vmem:[%s3 + $0x4c] sm:$0xf]
    %v2610 = vld [vmem:[%s3 + $0x50] sm:$0xf]
    %v2611 = vld [vmem:[%s3 + $0x54] sm:$0xf]
    %v2612 = vld [vmem:[%s3 + $0x58] sm:$0xf]
    %v2613 = vld [vmem:[%s3 + $0x5c] sm:$0xf]
    %v2614 = vld [vmem:[%s3 + $0x60] sm:$0xf]
    %v2615 = vld [vmem:[%s3 + $0x64] sm:$0xf]
    %v2616 = vld [vmem:[%s3 + $0x68] sm:$0xf]
    %v2617 = vld [vmem:[%s3 + $0x6c] sm:$0xf]
    %v2618 = vld [vmem:[%s3 + $0x70] sm:$0xf]
    %v2619 = vld [vmem:[%s3 + $0x74] sm:$0xf]
    %v2620 = vld [vmem:[%s3 + $0x78] sm:$0xf]
    %v2621 = vld [vmem:[%s3 + $0x7c] sm:$0xf]
    %v2622 = vld [vmem:[%s3 + $0x80] sm:$0xf]
    %v2623 = vld [vmem:[%s3 + $0x84] sm:$0xf]
    %v2624 = vld [vmem:[%s3 + $0x88] sm:$0xf]
    %v2625 = vld [vmem:[%s3 + $0x8c] sm:$0xf]
    %v2626 = vld [vmem:[%s4] sm:$0x1]
    %v2628 = vperm.slane %v2626, 0
    %v2666 = vunpack.c.l.b16 %v2590
    %v2667 = vunpack.c.l.b16 %v2591
    %v2668 = vunpack.c.l.b16 %v2592
    %v2669 = vunpack.c.l.b16 %v2593
    %v2670 = vunpack.c.l.b16 %v2594
    %v2671 = vunpack.c.l.b16 %v2595
    %v2672 = vunpack.c.l.b16 %v2596
    %v2673 = vunpack.c.l.b16 %v2597
    %v2674 = vunpack.c.l.b16 %v2598
    %v2675 = vunpack.c.l.b16 %v2599
    %v2676 = vunpack.c.l.b16 %v2600
    %v2677 = vunpack.c.l.b16 %v2601
    %v2678 = vunpack.c.l.b16 %v2602
    %v2679 = vunpack.c.l.b16 %v2603
    %v2680 = vunpack.c.l.b16 %v2604
    %v2681 = vunpack.c.l.b16 %v2605
    %v2682 = vunpack.c.l.b16 %v2606
    %v2683 = vunpack.c.l.b16 %v2607
    %v2684 = vunpack.c.l.b16 %v2608
    %v2685 = vunpack.c.l.b16 %v2609
    %v2686 = vunpack.c.l.b16 %v2610
    %v2687 = vunpack.c.l.b16 %v2611
    %v2688 = vunpack.c.l.b16 %v2612
    %v2689 = vunpack.c.l.b16 %v2613
    %v2690 = vunpack.c.l.b16 %v2614
    %v2691 = vunpack.c.l.b16 %v2615
    %v2692 = vunpack.c.l.b16 %v2616
    %v2693 = vunpack.c.l.b16 %v2617
    %v2694 = vunpack.c.l.b16 %v2618
    %v2695 = vunpack.c.l.b16 %v2619
    %v2696 = vunpack.c.l.b16 %v2620
    %v2697 = vunpack.c.l.b16 %v2621
    %v2698 = vunpack.c.l.b16 %v2622
    %v2699 = vunpack.c.l.b16 %v2623
    %v2700 = vunpack.c.l.b16 %v2624
    %v2701 = vunpack.c.l.b16 %v2625
    %v2702 = vpack.c.b16 %v2667, %v2666
    %v2703 = vpack.c.b16 %v2669, %v2668
    %v2704 = vpack.c.b16 %v2671, %v2670
    %v2705 = vpack.c.b16 %v2673, %v2672
    %v2706 = vpack.c.b16 %v2675, %v2674
    %v2707 = vpack.c.b16 %v2677, %v2676
    %v2708 = vpack.c.b16 %v2679, %v2678
    %v2709 = vpack.c.b16 %v2681, %v2680
    %v2710 = vpack.c.b16 %v2683, %v2682
    %v2711 = vpack.c.b16 %v2685, %v2684
    %v2712 = vpack.c.b16 %v2687, %v2686
    %v2713 = vpack.c.b16 %v2689, %v2688
    %v2714 = vpack.c.b16 %v2691, %v2690
    %v2715 = vpack.c.b16 %v2693, %v2692
    %v2716 = vpack.c.b16 %v2695, %v2694
    %v2717 = vpack.c.b16 %v2697, %v2696
    %v2718 = vpack.c.b16 %v2699, %v2698
    %v2719 = vpack.c.b16 %v2701, %v2700
    %v2739 = vsel %vm272, %v1681, 0
    %v2742 = vsel %vm272, %v1684, 0
    %v2745 = vsel %vm272, %v1687, 0
    %v2748 = vsel %vm272, %v1690, 0
    %v2751 = vsel %vm272, %v1693, 0
    %v2754 = vsel %vm272, %v1696, 0
    %v2757 = vsel %vm272, %v1699, 0
    %v2760 = vsel %vm272, %v1702, 0
    %v2763 = vsel %vm272, %v1705, 0
    %v2766 = vsel %vm272, %v1708, 0
    %v2769 = vsel %vm272, %v1711, 0
    %v2772 = vsel %vm272, %v1714, 0
    %v2775 = vsel %vm272, %v1717, 0
    %v2778 = vsel %vm272, %v1720, 0
    %v2781 = vsel %vm272, %v1922, 0
    %v2784 = vsel %vm272, %v1675, 0
    %v2787 = vsel %vm272, %v1726, 0
    %v2790 = vsel %vm272, %v1729, 0
    %v2793 = vsel %vm272, %v1732, 0
    %v2796 = vsel %vm272, %v1735, 0
    %v2799 = vsel %vm272, %v1738, 0
    %v2802 = vsel %vm272, %v1741, 0
    %v2805 = vsel %vm272, %v1744, 0
    %v2808 = vsel %vm272, %v1747, 0
    %v2811 = vsel %vm272, %v1750, 0
    %v2814 = vsel %vm272, %v1753, 0
    %v2817 = vsel %vm272, %v1756, 0
    %v2820 = vsel %vm272, %v1759, 0
    %v2823 = vsel %vm272, %v1762, 0
    %v2826 = vsel %vm272, %v1765, 0
    %v2829 = vsel %vm272, %v1925, 0
    %2831 = vmatpush.bf16.msra.mxu0 %v2709
    %2832 = vmatpush.bf16.msra.mxu0 %v2708
    %2833 = vmatpush.bf16.msra.mxu0 %v2707
    %2834 = vmatpush.bf16.msra.mxu0 %v2706
    %2835 = vmatpush.bf16.msra.mxu0 %v2705
    %2836 = vmatpush.bf16.msra.mxu0 %v2704
    %2837 = vmatpush.bf16.msra.mxu0 %v2703
    %2838 = vmatpush.bf16.msra.mxu0 %v2702
    %2839 = vmatmul.bf16.gmra.mxu0 %v2241
    %v2840 = vpop.f32.mrf.mxu0
    %v2841 = vadd.f32 %v2628, %v2840
    %v2842 = vpop.f32.mrf.mxu0
    %v2843 = vadd.f32 %v2628, %v2842
    %2844 = vmatmul.bf16.gmra.mxu0 %v2244
    %v2845 = vpop.f32.mrf.mxu0
    %v2846 = vadd.f32 %v2628, %v2845
    %v2847 = vpop.f32.mrf.mxu0
    %v2848 = vadd.f32 %v2628, %v2847
    %2849 = vmatmul.bf16.gmra.mxu0 %v2247
    %v2850 = vpop.f32.mrf.mxu0
    %v2851 = vadd.f32 %v2628, %v2850
    %v2852 = vpop.f32.mrf.mxu0
    %v2853 = vadd.f32 %v2628, %v2852
    %2854 = vmatmul.bf16.gmra.mxu0 %v2250
    %v2855 = vpop.f32.mrf.mxu0
    %v2856 = vadd.f32 %v2628, %v2855
    %v2857 = vpop.f32.mrf.mxu0
    %v2858 = vadd.f32 %v2628, %v2857
    %2859 = vmatmul.bf16.gmra.mxu0 %v2253
    %v2860 = vpop.f32.mrf.mxu0
    %v2861 = vadd.f32 %v2628, %v2860
    %v2862 = vpop.f32.mrf.mxu0
    %v2863 = vadd.f32 %v2628, %v2862
    %2864 = vmatmul.bf16.gmra.mxu0 %v2256
    %v2865 = vpop.f32.mrf.mxu0
    %v2866 = vadd.f32 %v2628, %v2865
    %v2867 = vpop.f32.mrf.mxu0
    %v2868 = vadd.f32 %v2628, %v2867
    %2869 = vmatmul.bf16.gmra.mxu0 %v2259
    %v2870 = vpop.f32.mrf.mxu0
    %v2871 = vadd.f32 %v2628, %v2870
    %v2872 = vpop.f32.mrf.mxu0
    %v2873 = vadd.f32 %v2628, %v2872
    %2874 = vmatmul.bf16.gmra.mxu0 %v2262
    %v2875 = vpop.f32.mrf.mxu0
    %v2876 = vadd.f32 %v2628, %v2875
    %v2877 = vpop.f32.mrf.mxu0
    %v2878 = vadd.f32 %v2628, %v2877
    %2879 = vmatmul.bf16.gmra.mxu0 %v2265
    %v2880 = vpop.f32.mrf.mxu0
    %v2881 = vadd.f32 %v2628, %v2880
    %v2882 = vpop.f32.mrf.mxu0
    %v2883 = vadd.f32 %v2628, %v2882
    %2884 = vmatmul.bf16.gmra.mxu0 %v2268
    %v2885 = vpop.f32.mrf.mxu0
    %v2886 = vadd.f32 %v2628, %v2885
    %v2887 = vpop.f32.mrf.mxu0
    %v2888 = vadd.f32 %v2628, %v2887
    %2889 = vmatmul.bf16.gmra.mxu0 %v2271
    %v2890 = vpop.f32.mrf.mxu0
    %v2891 = vadd.f32 %v2628, %v2890
    %v2892 = vpop.f32.mrf.mxu0
    %v2893 = vadd.f32 %v2628, %v2892
    %2894 = vmatmul.bf16.gmra.mxu0 %v2274
    %v2895 = vpop.f32.mrf.mxu0
    %v2896 = vadd.f32 %v2628, %v2895
    %v2897 = vpop.f32.mrf.mxu0
    %v2898 = vadd.f32 %v2628, %v2897
    %2899 = vmatmul.bf16.gmra.mxu0 %v2277
    %v2900 = vpop.f32.mrf.mxu0
    %v2901 = vadd.f32 %v2628, %v2900
    %v2902 = vpop.f32.mrf.mxu0
    %v2903 = vadd.f32 %v2628, %v2902
    %2904 = vmatmul.bf16.gmra.mxu0 %v2280
    %v2905 = vpop.f32.mrf.mxu0
    %v2906 = vadd.f32 %v2628, %v2905
    %v2907 = vpop.f32.mrf.mxu0
    %v2908 = vadd.f32 %v2628, %v2907
    %2909 = vmatmul.bf16.gmra.mxu0 %v2283
    %v2910 = vpop.f32.mrf.mxu0
    %v2911 = vadd.f32 %v2628, %v2910
    %v2912 = vpop.f32.mrf.mxu0
    %v2913 = vadd.f32 %v2628, %v2912
    %2914 = vmatmul.bf16.gmra.mxu0 %v2286
    %v2915 = vpop.f32.mrf.mxu0
    %v2916 = vadd.f32 %v2628, %v2915
    %v2917 = vpop.f32.mrf.mxu0
    %v2918 = vadd.f32 %v2628, %v2917
    %2919 = vmatmul.bf16.gmra.mxu0 %v2289
    %v2920 = vpop.f32.mrf.mxu0
    %v2921 = vadd.f32 %v2628, %v2920
    %v2922 = vpop.f32.mrf.mxu0
    %v2923 = vadd.f32 %v2628, %v2922
    %2924 = vmatmul.bf16.gmra.mxu0 %v2292
    %v2925 = vpop.f32.mrf.mxu0
    %v2926 = vadd.f32 %v2628, %v2925
    %v2927 = vpop.f32.mrf.mxu0
    %v2928 = vadd.f32 %v2628, %v2927
    %2929 = vmatmul.bf16.gmra.mxu0 %v2295
    %v2930 = vpop.f32.mrf.mxu0
    %v2931 = vadd.f32 %v2628, %v2930
    %v2932 = vpop.f32.mrf.mxu0
    %v2933 = vadd.f32 %v2628, %v2932
    %2934 = vmatmul.bf16.gmra.mxu0 %v2298
    %v2935 = vpop.f32.mrf.mxu0
    %v2936 = vadd.f32 %v2628, %v2935
    %v2937 = vpop.f32.mrf.mxu0
    %v2938 = vadd.f32 %v2628, %v2937
    %2939 = vmatmul.bf16.gmra.mxu0 %v2301
    %v2940 = vpop.f32.mrf.mxu0
    %v2941 = vadd.f32 %v2628, %v2940
    %v2942 = vpop.f32.mrf.mxu0
    %v2943 = vadd.f32 %v2628, %v2942
    %2944 = vmatmul.bf16.gmra.mxu0 %v2304
    %v2945 = vpop.f32.mrf.mxu0
    %v2946 = vadd.f32 %v2628, %v2945
    %v2947 = vpop.f32.mrf.mxu0
    %v2948 = vadd.f32 %v2628, %v2947
    %2949 = vmatmul.bf16.gmra.mxu0 %v2307
    %v2950 = vpop.f32.mrf.mxu0
    %v2951 = vadd.f32 %v2628, %v2950
    %v2952 = vpop.f32.mrf.mxu0
    %v2953 = vadd.f32 %v2628, %v2952
    %2954 = vmatmul.bf16.gmra.mxu0 %v2310
    %v2955 = vpop.f32.mrf.mxu0
    %v2956 = vadd.f32 %v2628, %v2955
    %v2957 = vpop.f32.mrf.mxu0
    %v2958 = vadd.f32 %v2628, %v2957
    %2959 = vmatmul.bf16.gmra.mxu0 %v2313
    %v2960 = vpop.f32.mrf.mxu0
    %v2961 = vadd.f32 %v2628, %v2960
    %v2962 = vpop.f32.mrf.mxu0
    %v2963 = vadd.f32 %v2628, %v2962
    %2964 = vmatmul.bf16.gmra.mxu0 %v2316
    %v2965 = vpop.f32.mrf.mxu0
    %v2966 = vadd.f32 %v2628, %v2965
    %v2967 = vpop.f32.mrf.mxu0
    %v2968 = vadd.f32 %v2628, %v2967
    %2969 = vmatmul.bf16.gmra.mxu0 %v2319
    %v2970 = vpop.f32.mrf.mxu0
    %v2971 = vadd.f32 %v2628, %v2970
    %v2972 = vpop.f32.mrf.mxu0
    %v2973 = vadd.f32 %v2628, %v2972
    %2974 = vmatmul.bf16.gmra.mxu0 %v2322
    %v2975 = vpop.f32.mrf.mxu0
    %v2976 = vadd.f32 %v2628, %v2975
    %v2977 = vpop.f32.mrf.mxu0
    %v2978 = vadd.f32 %v2628, %v2977
    %2979 = vmatmul.bf16.gmra.mxu0 %v2325
    %v2980 = vpop.f32.mrf.mxu0
    %v2981 = vadd.f32 %v2628, %v2980
    %v2982 = vpop.f32.mrf.mxu0
    %v2983 = vadd.f32 %v2628, %v2982
    %2984 = vmatmul.bf16.gmra.mxu0 %v2328
    %v2985 = vpop.f32.mrf.mxu0
    %v2986 = vadd.f32 %v2628, %v2985
    %v2987 = vpop.f32.mrf.mxu0
    %v2988 = vadd.f32 %v2628, %v2987
    %2989 = vmatmul.bf16.gmra.mxu0 %v2331
    %v2990 = vpop.f32.mrf.mxu0
    %v2991 = vadd.f32 %v2628, %v2990
    %v2992 = vpop.f32.mrf.mxu0
    %v2993 = vadd.f32 %v2628, %v2992
    %2994 = vmatmul.bf16.gmra.mxu0 %v2334
    %v2995 = vpop.f32.mrf.mxu0
    %v2996 = vadd.f32 %v2628, %v2995
    %v2997 = vpop.f32.mrf.mxu0
    %v2998 = vadd.f32 %v2628, %v2997
    %2999 = vdwg.mxu0
    %3000 = vmatpush.bf16.msra.mxu0 %v2717
    %3001 = vmatpush.bf16.msra.mxu0 %v2716
    %3002 = vmatpush.bf16.msra.mxu0 %v2715
    %3003 = vmatpush.bf16.msra.mxu0 %v2714
    %3004 = vmatpush.bf16.msra.mxu0 %v2713
    %3005 = vmatpush.bf16.msra.mxu0 %v2712
    %3006 = vmatpush.bf16.msra.mxu0 %v2711
    %3007 = vmatpush.bf16.msra.mxu0 %v2710
    %3008 = vmatmul.bf16.gmra.mxu0 %v2496
    %v3009 = vpop.f32.mrf.mxu0
    %v3010 = vadd.f32 %v2841, %v3009
    %v3011 = vpop.f32.mrf.mxu0
    %v3012 = vadd.f32 %v2843, %v3011
    %3013 = vmatmul.bf16.gmra.mxu0 %v2499
    %v3014 = vpop.f32.mrf.mxu0
    %v3015 = vadd.f32 %v2846, %v3014
    %v3016 = vpop.f32.mrf.mxu0
    %v3017 = vadd.f32 %v2848, %v3016
    %3018 = vmatmul.bf16.gmra.mxu0 %v2502
    %v3019 = vpop.f32.mrf.mxu0
    %v3020 = vadd.f32 %v2851, %v3019
    %v3021 = vpop.f32.mrf.mxu0
    %v3022 = vadd.f32 %v2853, %v3021
    %3023 = vmatmul.bf16.gmra.mxu0 %v2505
    %v3024 = vpop.f32.mrf.mxu0
    %v3025 = vadd.f32 %v2856, %v3024
    %v3026 = vpop.f32.mrf.mxu0
    %v3027 = vadd.f32 %v2858, %v3026
    %3028 = vmatmul.bf16.gmra.mxu0 %v2508
    %v3029 = vpop.f32.mrf.mxu0
    %v3030 = vadd.f32 %v2861, %v3029
    %v3031 = vpop.f32.mrf.mxu0
    %v3032 = vadd.f32 %v2863, %v3031
    %3033 = vmatmul.bf16.gmra.mxu0 %v2511
    %v3034 = vpop.f32.mrf.mxu0
    %v3035 = vadd.f32 %v2866, %v3034
    %v3036 = vpop.f32.mrf.mxu0
    %v3037 = vadd.f32 %v2868, %v3036
    %3038 = vmatmul.bf16.gmra.mxu0 %v2514
    %v3039 = vpop.f32.mrf.mxu0
    %v3040 = vadd.f32 %v2871, %v3039
    %v3041 = vpop.f32.mrf.mxu0
    %v3042 = vadd.f32 %v2873, %v3041
    %3043 = vmatmul.bf16.gmra.mxu0 %v2517
    %v3044 = vpop.f32.mrf.mxu0
    %v3045 = vadd.f32 %v2876, %v3044
    %v3046 = vpop.f32.mrf.mxu0
    %v3047 = vadd.f32 %v2878, %v3046
    %3048 = vmatmul.bf16.gmra.mxu0 %v2520
    %v3049 = vpop.f32.mrf.mxu0
    %v3050 = vadd.f32 %v2881, %v3049
    %v3051 = vpop.f32.mrf.mxu0
    %v3052 = vadd.f32 %v2883, %v3051
    %3053 = vmatmul.bf16.gmra.mxu0 %v2523
    %v3054 = vpop.f32.mrf.mxu0
    %v3055 = vadd.f32 %v2886, %v3054
    %v3056 = vpop.f32.mrf.mxu0
    %v3057 = vadd.f32 %v2888, %v3056
    %3058 = vmatmul.bf16.gmra.mxu0 %v2526
    %v3059 = vpop.f32.mrf.mxu0
    %v3060 = vadd.f32 %v2891, %v3059
    %v3061 = vpop.f32.mrf.mxu0
    %v3062 = vadd.f32 %v2893, %v3061
    %3063 = vmatmul.bf16.gmra.mxu0 %v2529
    %v3064 = vpop.f32.mrf.mxu0
    %v3065 = vadd.f32 %v2896, %v3064
    %v3066 = vpop.f32.mrf.mxu0
    %v3067 = vadd.f32 %v2898, %v3066
    %3068 = vmatmul.bf16.gmra.mxu0 %v2532
    %v3069 = vpop.f32.mrf.mxu0
    %v3070 = vadd.f32 %v2901, %v3069
    %v3071 = vpop.f32.mrf.mxu0
    %v3072 = vadd.f32 %v2903, %v3071
    %3073 = vmatmul.bf16.gmra.mxu0 %v2535
    %v3074 = vpop.f32.mrf.mxu0
    %v3075 = vadd.f32 %v2906, %v3074
    %v3076 = vpop.f32.mrf.mxu0
    %v3077 = vadd.f32 %v2908, %v3076
    %3078 = vmatmul.bf16.gmra.mxu0 %v2538
    %v3079 = vpop.f32.mrf.mxu0
    %v3080 = vadd.f32 %v2911, %v3079
    %v3081 = vpop.f32.mrf.mxu0
    %v3082 = vadd.f32 %v2913, %v3081
    %3083 = vmatmul.bf16.gmra.mxu0 %v2541
    %v3084 = vpop.f32.mrf.mxu0
    %v3085 = vadd.f32 %v2916, %v3084
    %v3086 = vpop.f32.mrf.mxu0
    %v3087 = vadd.f32 %v2918, %v3086
    %3088 = vmatmul.bf16.gmra.mxu0 %v2544
    %v3089 = vpop.f32.mrf.mxu0
    %v3090 = vadd.f32 %v2921, %v3089
    %v3091 = vpop.f32.mrf.mxu0
    %v3092 = vadd.f32 %v2923, %v3091
    %3093 = vmatmul.bf16.gmra.mxu0 %v2547
    %v3094 = vpop.f32.mrf.mxu0
    %v3095 = vadd.f32 %v2926, %v3094
    %v3096 = vpop.f32.mrf.mxu0
    %v3097 = vadd.f32 %v2928, %v3096
    %3098 = vmatmul.bf16.gmra.mxu0 %v2550
    %v3099 = vpop.f32.mrf.mxu0
    %v3100 = vadd.f32 %v2931, %v3099
    %v3101 = vpop.f32.mrf.mxu0
    %v3102 = vadd.f32 %v2933, %v3101
    %3103 = vmatmul.bf16.gmra.mxu0 %v2553
    %v3104 = vpop.f32.mrf.mxu0
    %v3105 = vadd.f32 %v2936, %v3104
    %v3106 = vpop.f32.mrf.mxu0
    %v3107 = vadd.f32 %v2938, %v3106
    %3108 = vmatmul.bf16.gmra.mxu0 %v2556
    %v3109 = vpop.f32.mrf.mxu0
    %v3110 = vadd.f32 %v2941, %v3109
    %v3111 = vpop.f32.mrf.mxu0
    %v3112 = vadd.f32 %v2943, %v3111
    %3113 = vmatmul.bf16.gmra.mxu0 %v2559
    %v3114 = vpop.f32.mrf.mxu0
    %v3115 = vadd.f32 %v2946, %v3114
    %v3116 = vpop.f32.mrf.mxu0
    %v3117 = vadd.f32 %v2948, %v3116
    %3118 = vmatmul.bf16.gmra.mxu0 %v2562
    %v3119 = vpop.f32.mrf.mxu0
    %v3120 = vadd.f32 %v2951, %v3119
    %v3121 = vpop.f32.mrf.mxu0
    %v3122 = vadd.f32 %v2953, %v3121
    %3123 = vmatmul.bf16.gmra.mxu0 %v2565
    %v3124 = vpop.f32.mrf.mxu0
    %v3125 = vadd.f32 %v2956, %v3124
    %v3126 = vpop.f32.mrf.mxu0
    %v3127 = vadd.f32 %v2958, %v3126
    %3128 = vmatmul.bf16.gmra.mxu0 %v2568
    %v3129 = vpop.f32.mrf.mxu0
    %v3130 = vadd.f32 %v2961, %v3129
    %v3131 = vpop.f32.mrf.mxu0
    %v3132 = vadd.f32 %v2963, %v3131
    %3133 = vmatmul.bf16.gmra.mxu0 %v2571
    %v3134 = vpop.f32.mrf.mxu0
    %v3135 = vadd.f32 %v2966, %v3134
    %v3136 = vpop.f32.mrf.mxu0
    %v3137 = vadd.f32 %v2968, %v3136
    %3138 = vmatmul.bf16.gmra.mxu0 %v2574
    %v3139 = vpop.f32.mrf.mxu0
    %v3140 = vadd.f32 %v2971, %v3139
    %v3141 = vpop.f32.mrf.mxu0
    %v3142 = vadd.f32 %v2973, %v3141
    %3143 = vmatmul.bf16.gmra.mxu0 %v2577
    %v3144 = vpop.f32.mrf.mxu0
    %v3145 = vadd.f32 %v2976, %v3144
    %v3146 = vpop.f32.mrf.mxu0
    %v3147 = vadd.f32 %v2978, %v3146
    %3148 = vmatmul.bf16.gmra.mxu0 %v2580
    %v3149 = vpop.f32.mrf.mxu0
    %v3150 = vadd.f32 %v2981, %v3149
    %v3151 = vpop.f32.mrf.mxu0
    %v3152 = vadd.f32 %v2983, %v3151
    %3153 = vmatmul.bf16.gmra.mxu0 %v2583
    %v3154 = vpop.f32.mrf.mxu0
    %v3155 = vadd.f32 %v2986, %v3154
    %v3156 = vpop.f32.mrf.mxu0
    %v3157 = vadd.f32 %v2988, %v3156
    %3158 = vmatmul.bf16.gmra.mxu0 %v2586
    %v3159 = vpop.f32.mrf.mxu0
    %v3160 = vadd.f32 %v2991, %v3159
    %v3161 = vpop.f32.mrf.mxu0
    %v3162 = vadd.f32 %v2993, %v3161
    %3163 = vmatmul.bf16.gmra.mxu0 %v2588
    %v3164 = vpop.f32.mrf.mxu0
    %v3165 = vadd.f32 %v2996, %v3164
    %v3166 = vpop.f32.mrf.mxu0
    %v3167 = vadd.f32 %v2998, %v3166
    %3168 = vdwg.mxu0
    %3169 = vmatpush.bf16.msra.mxu0 0
    %3170 = vmatpush.bf16.msra.mxu0 0
    %3171 = vmatpush.bf16.msra.mxu0 0
    %3172 = vmatpush.bf16.msra.mxu0 0
    %3173 = vmatpush.bf16.msra.mxu0 0
    %3174 = vmatpush.bf16.msra.mxu0 0
    %3175 = vmatpush.bf16.msra.mxu0 %v2719
    %3176 = vmatpush.bf16.msra.mxu0 %v2718
    %3177 = vmatmul.bf16.gmra.mxu0 %v2739
    %v3178 = vpop.f32.mrf.mxu0
    %v3179 = vadd.f32 %v3010, %v3178
    %v3180 = vpop.f32.mrf.mxu0
    %v3181 = vadd.f32 %v3012, %v3180
    %3182 = vmatmul.bf16.gmra.mxu0 %v2742
    %v3183 = vpop.f32.mrf.mxu0
    %v3184 = vadd.f32 %v3015, %v3183
    %v3185 = vpop.f32.mrf.mxu0
    %v3186 = vadd.f32 %v3017, %v3185
    %3187 = vmatmul.bf16.gmra.mxu0 %v2745
    %v3188 = vpop.f32.mrf.mxu0
    %v3189 = vadd.f32 %v3020, %v3188
    %v3190 = vpop.f32.mrf.mxu0
    %v3191 = vadd.f32 %v3022, %v3190
    %3192 = vmatmul.bf16.gmra.mxu0 %v2748
    %v3193 = vpop.f32.mrf.mxu0
    %v3194 = vadd.f32 %v3025, %v3193
    %v3195 = vpop.f32.mrf.mxu0
    %v3196 = vadd.f32 %v3027, %v3195
    %3197 = vmatmul.bf16.gmra.mxu0 %v2751
    %v3198 = vpop.f32.mrf.mxu0
    %v3199 = vadd.f32 %v3030, %v3198
    %v3200 = vpop.f32.mrf.mxu0
    %v3201 = vadd.f32 %v3032, %v3200
    %3202 = vmatmul.bf16.gmra.mxu0 %v2754
    %v3203 = vpop.f32.mrf.mxu0
    %v3204 = vadd.f32 %v3035, %v3203
    %v3205 = vpop.f32.mrf.mxu0
    %v3206 = vadd.f32 %v3037, %v3205
    %3207 = vmatmul.bf16.gmra.mxu0 %v2757
    %v3208 = vpop.f32.mrf.mxu0
    %v3209 = vadd.f32 %v3040, %v3208
    %v3210 = vpop.f32.mrf.mxu0
    %v3211 = vadd.f32 %v3042, %v3210
    %3212 = vmatmul.bf16.gmra.mxu0 %v2760
    %v3213 = vpop.f32.mrf.mxu0
    %v3214 = vadd.f32 %v3045, %v3213
    %v3215 = vpop.f32.mrf.mxu0
    %v3216 = vadd.f32 %v3047, %v3215
    %3217 = vmatmul.bf16.gmra.mxu0 %v2763
    %v3218 = vpop.f32.mrf.mxu0
    %v3219 = vadd.f32 %v3050, %v3218
    %v3220 = vpop.f32.mrf.mxu0
    %v3221 = vadd.f32 %v3052, %v3220
    %3222 = vmatmul.bf16.gmra.mxu0 %v2766
    %v3223 = vpop.f32.mrf.mxu0
    %v3224 = vadd.f32 %v3055, %v3223
    %v3225 = vpop.f32.mrf.mxu0
    %v3226 = vadd.f32 %v3057, %v3225
    %3227 = vmatmul.bf16.gmra.mxu0 %v2769
    %v3228 = vpop.f32.mrf.mxu0
    %v3229 = vadd.f32 %v3060, %v3228
    %v3230 = vpop.f32.mrf.mxu0
    %v3231 = vadd.f32 %v3062, %v3230
    %3232 = vmatmul.bf16.gmra.mxu0 %v2772
    %v3233 = vpop.f32.mrf.mxu0
    %v3234 = vadd.f32 %v3065, %v3233
    %v3235 = vpop.f32.mrf.mxu0
    %v3236 = vadd.f32 %v3067, %v3235
    %3237 = vmatmul.bf16.gmra.mxu0 %v2775
    %v3238 = vpop.f32.mrf.mxu0
    %v3239 = vadd.f32 %v3070, %v3238
    %v3240 = vpop.f32.mrf.mxu0
    %v3241 = vadd.f32 %v3072, %v3240
    %3242 = vmatmul.bf16.gmra.mxu0 %v2778
    %v3243 = vpop.f32.mrf.mxu0
    %v3244 = vadd.f32 %v3075, %v3243
    %v3245 = vpop.f32.mrf.mxu0
    %v3246 = vadd.f32 %v3077, %v3245
    %3247 = vmatmul.bf16.gmra.mxu0 %v2781
    %v3248 = vpop.f32.mrf.mxu0
    %v3249 = vadd.f32 %v3080, %v3248
    %v3250 = vpop.f32.mrf.mxu0
    %v3251 = vadd.f32 %v3082, %v3250
    %3252 = vmatmul.bf16.gmra.mxu0 %v2784
    %v3253 = vpop.f32.mrf.mxu0
    %v3254 = vadd.f32 %v3085, %v3253
    %v3255 = vpop.f32.mrf.mxu0
    %v3256 = vadd.f32 %v3087, %v3255
    %3257 = vmatmul.bf16.gmra.mxu0 %v2787
    %v3258 = vpop.f32.mrf.mxu0
    %v3259 = vadd.f32 %v3090, %v3258
    %v3260 = vpop.f32.mrf.mxu0
    %v3261 = vadd.f32 %v3092, %v3260
    %3262 = vmatmul.bf16.gmra.mxu0 %v2790
    %v3263 = vpop.f32.mrf.mxu0
    %v3264 = vadd.f32 %v3095, %v3263
    %v3265 = vpop.f32.mrf.mxu0
    %v3266 = vadd.f32 %v3097, %v3265
    %3267 = vmatmul.bf16.gmra.mxu0 %v2793
    %v3268 = vpop.f32.mrf.mxu0
    %v3269 = vadd.f32 %v3100, %v3268
    %v3270 = vpop.f32.mrf.mxu0
    %v3271 = vadd.f32 %v3102, %v3270
    %3272 = vmatmul.bf16.gmra.mxu0 %v2796
    %v3273 = vpop.f32.mrf.mxu0
    %v3274 = vadd.f32 %v3105, %v3273
    %v3275 = vpop.f32.mrf.mxu0
    %v3276 = vadd.f32 %v3107, %v3275
    %3277 = vmatmul.bf16.gmra.mxu0 %v2799
    %v3278 = vpop.f32.mrf.mxu0
    %v3279 = vadd.f32 %v3110, %v3278
    %v3280 = vpop.f32.mrf.mxu0
    %v3281 = vadd.f32 %v3112, %v3280
    %3282 = vmatmul.bf16.gmra.mxu0 %v2802
    %v3283 = vpop.f32.mrf.mxu0
    %v3284 = vadd.f32 %v3115, %v3283
    %v3285 = vpop.f32.mrf.mxu0
    %v3286 = vadd.f32 %v3117, %v3285
    %3287 = vmatmul.bf16.gmra.mxu0 %v2805
    %v3288 = vpop.f32.mrf.mxu0
    %v3289 = vadd.f32 %v3120, %v3288
    %v3290 = vpop.f32.mrf.mxu0
    %v3291 = vadd.f32 %v3122, %v3290
    %3292 = vmatmul.bf16.gmra.mxu0 %v2808
    %v3293 = vpop.f32.mrf.mxu0
    %v3294 = vadd.f32 %v3125, %v3293
    %v3295 = vpop.f32.mrf.mxu0
    %v3296 = vadd.f32 %v3127, %v3295
    %3297 = vmatmul.bf16.gmra.mxu0 %v2811
    %v3298 = vpop.f32.mrf.mxu0
    %v3299 = vadd.f32 %v3130, %v3298
    %v3300 = vpop.f32.mrf.mxu0
    %v3301 = vadd.f32 %v3132, %v3300
    %3302 = vmatmul.bf16.gmra.mxu0 %v2814
    %v3303 = vpop.f32.mrf.mxu0
    %v3304 = vadd.f32 %v3135, %v3303
    %v3305 = vpop.f32.mrf.mxu0
    %v3306 = vadd.f32 %v3137, %v3305
    %3307 = vmatmul.bf16.gmra.mxu0 %v2817
    %v3308 = vpop.f32.mrf.mxu0
    %v3309 = vadd.f32 %v3140, %v3308
    %v3310 = vpop.f32.mrf.mxu0
    %v3311 = vadd.f32 %v3142, %v3310
    %3312 = vmatmul.bf16.gmra.mxu0 %v2820
    %v3313 = vpop.f32.mrf.mxu0
    %v3314 = vadd.f32 %v3145, %v3313
    %v3315 = vpop.f32.mrf.mxu0
    %v3316 = vadd.f32 %v3147, %v3315
    %3317 = vmatmul.bf16.gmra.mxu0 %v2823
    %v3318 = vpop.f32.mrf.mxu0
    %v3319 = vadd.f32 %v3150, %v3318
    %v3320 = vpop.f32.mrf.mxu0
    %v3321 = vadd.f32 %v3152, %v3320
    %3322 = vmatmul.bf16.gmra.mxu0 %v2826
    %v3323 = vpop.f32.mrf.mxu0
    %v3324 = vadd.f32 %v3155, %v3323
    %v3325 = vpop.f32.mrf.mxu0
    %v3326 = vadd.f32 %v3157, %v3325
    %3327 = vmatmul.bf16.gmra.mxu0 %v2829
    %v3328 = vpop.f32.mrf.mxu0
    %v3329 = vadd.f32 %v3160, %v3328
    %v3330 = vpop.f32.mrf.mxu0
    %v3331 = vadd.f32 %v3162, %v3330
    %3332 = vmatmul.bf16.gmra.mxu0 %v2784
    %v3333 = vpop.f32.mrf.mxu0
    %v3334 = vadd.f32 %v3165, %v3333
    %v3335 = vpop.f32.mrf.mxu0
    %v3336 = vadd.f32 %v3167, %v3335
    %3337 = vdwg.mxu0
    %v3338 = vmax.f32 %v3179, 0.0
    %v3339 = vmax.f32 %v3181, 0.0
    %v3340 = vmax.f32 %v3184, 0.0
    %v3341 = vmax.f32 %v3186, 0.0
    %v3342 = vmax.f32 %v3189, 0.0
    %v3343 = vmax.f32 %v3191, 0.0
    %v3344 = vmax.f32 %v3194, 0.0
    %v3345 = vmax.f32 %v3196, 0.0
    %v3346 = vmax.f32 %v3199, 0.0
    %v3347 = vmax.f32 %v3201, 0.0
    %v3348 = vmax.f32 %v3204, 0.0
    %v3349 = vmax.f32 %v3206, 0.0
    %v3350 = vmax.f32 %v3209, 0.0
    %v3351 = vmax.f32 %v3211, 0.0
    %v3352 = vmax.f32 %v3214, 0.0
    %v3353 = vmax.f32 %v3216, 0.0
    %v3354 = vmax.f32 %v3219, 0.0
    %v3355 = vmax.f32 %v3221, 0.0
    %v3356 = vmax.f32 %v3224, 0.0
    %v3357 = vmax.f32 %v3226, 0.0
    %v3358 = vmax.f32 %v3229, 0.0
    %v3359 = vmax.f32 %v3231, 0.0
    %v3360 = vmax.f32 %v3234, 0.0
    %v3361 = vmax.f32 %v3236, 0.0
    %v3362 = vmax.f32 %v3239, 0.0
    %v3363 = vmax.f32 %v3241, 0.0
    %v3364 = vmax.f32 %v3244, 0.0
    %v3365 = vmax.f32 %v3246, 0.0
    %v3366 = vmax.f32 %v3249, 0.0
    %v3367 = vmax.f32 %v3251, 0.0
    %v3368 = vmax.f32 %v3254, 0.0
    %v3369 = vmax.f32 %v3256, 0.0
    %v3370 = vmax.f32 %v3259, 0.0
    %v3371 = vmax.f32 %v3261, 0.0
    %v3372 = vmax.f32 %v3264, 0.0
    %v3373 = vmax.f32 %v3266, 0.0
    %v3374 = vmax.f32 %v3269, 0.0
    %v3375 = vmax.f32 %v3271, 0.0
    %v3376 = vmax.f32 %v3274, 0.0
    %v3377 = vmax.f32 %v3276, 0.0
    %v3378 = vmax.f32 %v3279, 0.0
    %v3379 = vmax.f32 %v3281, 0.0
    %v3380 = vmax.f32 %v3284, 0.0
    %v3381 = vmax.f32 %v3286, 0.0
    %v3382 = vmax.f32 %v3289, 0.0
    %v3383 = vmax.f32 %v3291, 0.0
    %v3384 = vmax.f32 %v3294, 0.0
    %v3385 = vmax.f32 %v3296, 0.0
    %v3386 = vmax.f32 %v3299, 0.0
    %v3387 = vmax.f32 %v3301, 0.0
    %v3388 = vmax.f32 %v3304, 0.0
    %v3389 = vmax.f32 %v3306, 0.0
    %v3390 = vmax.f32 %v3309, 0.0
    %v3391 = vmax.f32 %v3311, 0.0
    %v3392 = vmax.f32 %v3314, 0.0
    %v3393 = vmax.f32 %v3316, 0.0
    %v3394 = vmax.f32 %v3319, 0.0
    %v3395 = vmax.f32 %v3321, 0.0
    %v3396 = vmax.f32 %v3324, 0.0
    %v3397 = vmax.f32 %v3326, 0.0
    %v3398 = vmax.f32 %v3329, 0.0
    %v3399 = vmax.f32 %v3331, 0.0
    %v3400 = vmax.f32 %v3334, 0.0
    %v3401 = vmax.f32 %v3336, 0.0
    %v3402 = vsel %vm2176, %v3338, 0.0
    %v3403 = vsel %vm2176, %v3339, 0.0
    %v3404 = vadd.f32 %v3402, %v3403
    %v3405 = vsel %vm2176, %v3340, 0.0
    %v3406 = vadd.f32 %v3404, %v3405
    %v3407 = vsel %vm2176, %v3341, 0.0
    %v3408 = vadd.f32 %v3406, %v3407
    %v3409 = vsel %vm2176, %v3342, 0.0
    %v3410 = vadd.f32 %v3408, %v3409
    %v3411 = vsel %vm2176, %v3343, 0.0
    %v3412 = vadd.f32 %v3410, %v3411
    %v3413 = vsel %vm2176, %v3344, 0.0
    %v3414 = vadd.f32 %v3412, %v3413
    %v3415 = vsel %vm2176, %v3345, 0.0
    %v3416 = vadd.f32 %v3414, %v3415
    %v3417 = vsel %vm2176, %v3346, 0.0
    %v3418 = vadd.f32 %v3416, %v3417
    %v3419 = vsel %vm2176, %v3347, 0.0
    %v3420 = vadd.f32 %v3418, %v3419
    %v3421 = vsel %vm2176, %v3348, 0.0
    %v3422 = vadd.f32 %v3420, %v3421
    %v3423 = vsel %vm2176, %v3349, 0.0
    %v3424 = vadd.f32 %v3422, %v3423
    %v3425 = vsel %vm2176, %v3350, 0.0
    %v3426 = vadd.f32 %v3424, %v3425
    %v3427 = vsel %vm2176, %v3351, 0.0
    %v3428 = vadd.f32 %v3426, %v3427
    %v3429 = vsel %vm2176, %v3352, 0.0
    %v3430 = vadd.f32 %v3428, %v3429
    %v3431 = vsel %vm2176, %v3353, 0.0
    %v3432 = vadd.f32 %v3430, %v3431
    %v3433 = vsel %vm2176, %v3354, 0.0
    %v3434 = vadd.f32 %v3432, %v3433
    %v3435 = vsel %vm2176, %v3355, 0.0
    %v3436 = vadd.f32 %v3434, %v3435
    %v3437 = vsel %vm2176, %v3356, 0.0
    %v3438 = vadd.f32 %v3436, %v3437
    %v3439 = vsel %vm2176, %v3357, 0.0
    %v3440 = vadd.f32 %v3438, %v3439
    %v3441 = vsel %vm2176, %v3358, 0.0
    %v3442 = vadd.f32 %v3440, %v3441
    %v3443 = vsel %vm2176, %v3359, 0.0
    %v3444 = vadd.f32 %v3442, %v3443
    %v3445 = vsel %vm2176, %v3360, 0.0
    %v3446 = vadd.f32 %v3444, %v3445
    %v3447 = vsel %vm2176, %v3361, 0.0
    %v3448 = vadd.f32 %v3446, %v3447
    %v3449 = vsel %vm2176, %v3362, 0.0
    %v3450 = vadd.f32 %v3448, %v3449
    %v3451 = vsel %vm2176, %v3363, 0.0
    %v3452 = vadd.f32 %v3450, %v3451
    %v3453 = vsel %vm2176, %v3364, 0.0
    %v3454 = vadd.f32 %v3452, %v3453
    %v3455 = vsel %vm2176, %v3365, 0.0
    %v3456 = vadd.f32 %v3454, %v3455
    %v3457 = vsel %vm2176, %v3366, 0.0
    %v3458 = vadd.f32 %v3456, %v3457
    %v3459 = vsel %vm2176, %v3367, 0.0
    %v3460 = vadd.f32 %v3458, %v3459
    %v3461 = vsel %vm2176, %v3368, 0.0
    %v3462 = vadd.f32 %v3460, %v3461
    %v3463 = vsel %vm2176, %v3369, 0.0
    %v3464 = vadd.f32 %v3462, %v3463
    %v3465 = vrot.slane %v3464, 4
    %v3466 = vadd.f32 %v3464, %v3465
    %v3467 = vrot.slane %v3466, 2
    %v3468 = vadd.f32 %v3466, %v3467
    %v3469 = vrot.slane %v3468, 1
    %v3470 = vadd.f32 %v3468, %v3469
    %v3471 = vsel %vm2176, %v3370, 0.0
    %v3472 = vsel %vm2176, %v3371, 0.0
    %v3473 = vadd.f32 %v3471, %v3472
    %v3474 = vsel %vm2176, %v3372, 0.0
    %v3475 = vadd.f32 %v3473, %v3474
    %v3476 = vsel %vm2176, %v3373, 0.0
    %v3477 = vadd.f32 %v3475, %v3476
    %v3478 = vsel %vm2176, %v3374, 0.0
    %v3479 = vadd.f32 %v3477, %v3478
    %v3480 = vsel %vm2176, %v3375, 0.0
    %v3481 = vadd.f32 %v3479, %v3480
    %v3482 = vsel %vm2176, %v3376, 0.0
    %v3483 = vadd.f32 %v3481, %v3482
    %v3484 = vsel %vm2176, %v3377, 0.0
    %v3485 = vadd.f32 %v3483, %v3484
    %v3486 = vsel %vm2176, %v3378, 0.0
    %v3487 = vadd.f32 %v3485, %v3486
    %v3488 = vsel %vm2176, %v3379, 0.0
    %v3489 = vadd.f32 %v3487, %v3488
    %v3490 = vsel %vm2176, %v3380, 0.0
    %v3491 = vadd.f32 %v3489, %v3490
    %v3492 = vsel %vm2176, %v3381, 0.0
    %v3493 = vadd.f32 %v3491, %v3492
    %v3494 = vsel %vm2176, %v3382, 0.0
    %v3495 = vadd.f32 %v3493, %v3494
    %v3496 = vsel %vm2176, %v3383, 0.0
    %v3497 = vadd.f32 %v3495, %v3496
    %v3498 = vsel %vm2176, %v3384, 0.0
    %v3499 = vadd.f32 %v3497, %v3498
    %v3500 = vsel %vm2176, %v3385, 0.0
    %v3501 = vadd.f32 %v3499, %v3500
    %v3502 = vsel %vm2176, %v3386, 0.0
    %v3503 = vadd.f32 %v3501, %v3502
    %v3504 = vsel %vm2176, %v3387, 0.0
    %v3505 = vadd.f32 %v3503, %v3504
    %v3506 = vsel %vm2176, %v3388, 0.0
    %v3507 = vadd.f32 %v3505, %v3506
    %v3508 = vsel %vm2176, %v3389, 0.0
    %v3509 = vadd.f32 %v3507, %v3508
    %v3510 = vsel %vm2176, %v3390, 0.0
    %v3511 = vadd.f32 %v3509, %v3510
    %v3512 = vsel %vm2176, %v3391, 0.0
    %v3513 = vadd.f32 %v3511, %v3512
    %v3514 = vsel %vm2176, %v3392, 0.0
    %v3515 = vadd.f32 %v3513, %v3514
    %v3516 = vsel %vm2176, %v3393, 0.0
    %v3517 = vadd.f32 %v3515, %v3516
    %v3518 = vsel %vm2176, %v3394, 0.0
    %v3519 = vadd.f32 %v3517, %v3518
    %v3520 = vsel %vm2176, %v3395, 0.0
    %v3521 = vadd.f32 %v3519, %v3520
    %v3522 = vsel %vm2176, %v3396, 0.0
    %v3523 = vadd.f32 %v3521, %v3522
    %v3524 = vsel %vm2176, %v3397, 0.0
    %v3525 = vadd.f32 %v3523, %v3524
    %v3526 = vsel %vm2176, %v3398, 0.0
    %v3527 = vadd.f32 %v3525, %v3526
    %v3528 = vsel %vm2176, %v3399, 0.0
    %v3529 = vadd.f32 %v3527, %v3528
    %v3530 = vsel %vm2176, %v3400, 0.0
    %v3531 = vadd.f32 %v3529, %v3530
    %v3532 = vsel %vm2176, %v3401, 0.0
    %v3533 = vadd.f32 %v3531, %v3532
    %v3534 = vrot.slane %v3533, 4
    %v3535 = vadd.f32 %v3533, %v3534
    %v3536 = vrot.slane %v3535, 2
    %v3537 = vadd.f32 %v3535, %v3536
    %v3538 = vrot.slane %v3537, 1
    %v3539 = vadd.f32 %v3537, %v3538
    %v3540 = vrcp.pop 256.0
    %v3541 = vmul.f32 256.0, %v3540
    %v3542 = vsub.f32 1.0, %v3541
    %v3543 = vmul.f32 %v3540, %v3542
    %v3544 = vadd.f32 %v3540, %v3543
    %vm3545 = vweird.f32 %v3540
    %v3546 = vsel %vm3545, %v3540, %v3544
    %v3547 = vmul.f32 %v3470, %v3546
    %v3548 = vmul.f32 %v3539, %v3546
    %v3549 = vpack.c.bf16 %v3547, %v3547
    %v3550 = vpack.c.bf16 %v3548, %v3548
    %v3551 = vld [vmem:[%s5] sm:$0xff]
    %v3552 = vld [vmem:[%s5 + $0x8] sm:$0xff]
    %v3553 = vld [vmem:[%s5 + $0x10] sm:$0xff]
    %v3554 = vld [vmem:[%s5 + $0x18] sm:$0xff]
    %v3555 = vld [vmem:[%s5 + $0x20] sm:$0xff]
    %v3556 = vld [vmem:[%s5 + $0x28] sm:$0xff]
    %v3557 = vld [vmem:[%s5 + $0x30] sm:$0xff]
    %v3558 = vld [vmem:[%s5 + $0x38] sm:$0xff]
    %v3559 = vld [vmem:[%s6] sm:$0x3]
    %v3561 = vperm.slane %v3559, 0
    %v3562 = vperm.slane %v3559, 1
    %v3567 = vunpack.c.l.b16 %v3549
    %v3568 = vunpack.c.l.b16 %v3550
    %vm3569 = vcmask 1041409
    %v3570 = vsel %vm3569, %v3568, %v3567
    %v3571 = vpack.c.b16 %v3570, %v3570
    %v3580 = vunpack.c.l.b16 %v3551
    %v3581 = vunpack.c.h.b16 %v3551
    %v3582 = vunpack.c.l.b16 %v3552
    %v3583 = vunpack.c.h.b16 %v3552
    %v3584 = vunpack.c.l.b16 %v3553
    %v3585 = vunpack.c.h.b16 %v3553
    %v3586 = vunpack.c.l.b16 %v3554
    %v3587 = vunpack.c.h.b16 %v3554
    %v3588 = vunpack.c.l.b16 %v3555
    %v3589 = vunpack.c.h.b16 %v3555
    %v3590 = vunpack.c.l.b16 %v3556
    %v3591 = vunpack.c.h.b16 %v3556
    %v3592 = vunpack.c.l.b16 %v3557
    %v3593 = vunpack.c.h.b16 %v3557
    %v3594 = vunpack.c.l.b16 %v3558
    %v3595 = vunpack.c.h.b16 %v3558
    %v3596 = vpack.c.b16 %v3582, %v3580
    %v3597 = vpack.c.b16 %v3583, %v3581
    %v3598 = vpack.c.b16 %v3586, %v3584
    %v3599 = vpack.c.b16 %v3587, %v3585
    %v3600 = vpack.c.b16 %v3590, %v3588
    %v3601 = vpack.c.b16 %v3591, %v3589
    %v3602 = vpack.c.b16 %v3594, %v3592
    %v3603 = vpack.c.b16 %v3595, %v3593
    %v3613 = vsel %vm2176, %v3571, 0
    %3615 = vmatpush.bf16.msra.mxu0 0
    %3616 = vmatpush.bf16.msra.mxu0 0
    %3617 = vmatpush.bf16.msra.mxu0 0
    %3618 = vmatpush.bf16.msra.mxu0 0
    %3619 = vmatpush.bf16.msra.mxu0 %v3602
    %3620 = vmatpush.bf16.msra.mxu0 %v3600
    %3621 = vmatpush.bf16.msra.mxu0 %v3598
    %3622 = vmatpush.bf16.msra.mxu0 %v3596
    %3623 = vmatmul.bf16.gmra.mxu0 %v3613
    %v3624 = vpop.f32.mrf.mxu0
    %v3625 = vadd.f32 %v3561, %v3624
    %v3626 = vpop.f32.mrf.mxu0
    %3627 = vdwg.mxu0
    %3628 = vmatpush.bf16.msra.mxu0 0
    %3629 = vmatpush.bf16.msra.mxu0 0
    %3630 = vmatpush.bf16.msra.mxu0 0
    %3631 = vmatpush.bf16.msra.mxu0 0
    %3632 = vmatpush.bf16.msra.mxu0 %v3603
    %3633 = vmatpush.bf16.msra.mxu0 %v3601
    %3634 = vmatpush.bf16.msra.mxu0 %v3599
    %3635 = vmatpush.bf16.msra.mxu0 %v3597
    %3636 = vmatmul.bf16.gmra.mxu0 %v3613
    %v3637 = vpop.f32.mrf.mxu0
    %v3638 = vadd.f32 %v3562, %v3637
    %v3639 = vpop.f32.mrf.mxu0
    %3640 = vdwg.mxu0
    %v3641 = vmax.f32 %v3625, 0.0
    %v3642 = vmax.f32 %v3638, 0.0
    %vm3643 = vcmask 1041408
    %v3644 = vsel %vm3643, %v3641, 0.0
    %v3645 = vsel %vm3643, %v3642, 0.0
    %v3646 = vadd.f32 %v3644, %v3645
    %3647 = vadd.xlane.f32.xlu0 %v3646
    %v3648 = vpop.xlane.xlu0 %3647
    %v3649 = vadd.f32 %v3648, 1e-08
    %v3650 = vrcp.pop %v3649
    %v3651 = vmul.f32 %v3649, %v3650
    %v3652 = vsub.f32 1.0, %v3651
    %v3653 = vmul.f32 %v3650, %v3652
    %v3654 = vadd.f32 %v3650, %v3653
    %vm3655 = vweird.f32 %v3649
    %vm3656 = vweird.f32 %v3650
    %vm3657 = vmor %vm3655, %vm3656
    %v3658 = vsel %vm3657, %v3650, %v3654
    %v3659 = vand.u32 2147483647, %v3649
    %vm3660 = vcmp.eq.f32.partialorder %v3659, 8.507059e+37
    %v3661 = vand.u32 %v3649, 2147483648
    %v3662 = vor.u32 1.1754944e-38, %v3661
    %v3663 = vsel %vm3660, %v3662, %v3658
    %v3664 = vmul.f32 %v3641, %v3663
    %v3665 = vmul.f32 %v3642, %v3663
    %v3668 = vrot.slane %v3665, 6
    %v3669 = vsel %vm3643, %v3664, %v3668
    %3671 = vst [vmem:[#allocation2] sm:$0xf] %v3669
    // Predicated region
    $region30: #{tpu_custom_call.1} parent=1 // pred_check
      _
    $region31: #{tpu_custom_call.1} parent=1 // pred_check_branch
      %3673 = sbr.rel (0) target = $region33
    $region32: #{tpu_custom_call.1} parent=1 // pred_region
      %3675 = vsyncadd [#allocation3], 0
      %s3677 = sshll.u32 [#allocation2], 4
      %s3678 = int_to_ptr.vmem [resolvable:$true] %s3677
      %s3679 = sshll.u32 %s7, 4
      %s3680 = int_to_ptr.hbm [resolvable:$true] %s3679
      %3682 = dma.vmem_to_hbm [thread:$0]  %s3678, 64, %s3680, [#allocation3]
    $region33: #{tpu_custom_call.1} parent=1 // pred_fallthru
      _
    // Predicated region
    $region34: #{tpu_custom_call.1} parent=1 // pred_check
      _
    $region35: #{tpu_custom_call.1} parent=1 // pred_check_branch
      %3684 = sbr.rel (0) target = $region37
    $region36: #{tpu_custom_call.1} parent=1 // pred_region
      %3686 = dma.done [#allocation3], 64
    $region37: #{tpu_custom_call.1} parent=1 // pred_fallthru
      _
    %3687 = vsyncpa [#allocation3], 1

</llo_original>
